<compile_context>
chip_gen: v7x
topology: tpu7x:2x2x1
jax: 0.10.0
libtpu: 0.0.40
codegen_flags: <defaults>
</compile_context>

<pallas_src>
import functools

import jax
import jax.numpy as jnp
from jax import lax
from jax.experimental import pallas as pl
from jax.experimental.pallas import tpu as pltpu


def _elu_p1(x):
    # F.elu(x, alpha=1.0) + 1
    return jnp.where(x > 0, x + 1.0, jnp.exp(x))


def _layer_norm_fused(x, gamma, beta, eps=1e-5):
    # single-pass statistics (f32): var = E[x^2] - mean^2  (biased, as PyTorch LN)
    mean = jnp.mean(x, axis=-1, keepdims=True)
    mean_sq = jnp.mean(x * x, axis=-1, keepdims=True)
    var = jnp.maximum(mean_sq - mean * mean, 0.0)
    return (x - mean) * lax.rsqrt(var + eps) * gamma + beta


def _self_encoder_kernel(
        # inputs
        x_ref, src_ref, pose_ref, mask_ref,
        wq_ref, wk_ref, wkp_ref, wv_ref, wmerge_ref,
        ln1w_ref, ln1b_ref, w1a_ref, w1b_ref, w2_ref, ln2w_ref, ln2b_ref,
        # outputs
        out_ref,
        # scratch
        kv_ref, ksum_ref,
        *, s_len, matmul_dtype):
    """One (batch, L-tile) grid step of the LoFTR self-encoder layer."""
    # TODO(synk): x_mask / source_mask are not supported (default-None path only).
    f32 = jnp.float32
    md = matmul_dtype
    eps_attn = 1e-6

    # ---- per-batch-element work: masked KV and per-channel key sums ----------
    @pl.when(pl.program_id(1) == 0)
    def _compute_kv():
        src = src_ref[...]      # (S, C) f32
        pose = pose_ref[...]    # (S, C) f32
        # projections: weights are pre-transposed on the host (y = x @ W^T)
        k = jnp.dot(src.astype(md), wk_ref[...], preferred_element_type=f32)
        kp = jnp.dot(pose.astype(md), wkp_ref[...], preferred_element_type=f32)
        v = jnp.dot(src.astype(md), wv_ref[...], preferred_element_type=f32)
        kf = _elu_p1(k + kp)                       # (S, C) f32
        vals = v * (1.0 / s_len)                   # (S, C) f32
        # KV[d, e] = sum_s Kf[s, d] * vals[s, e]   (contract over S; no .T)
        kv = lax.dot_general(kf.astype(md), vals.astype(md),
                             dimension_numbers=(((0,), (0,)), ((), ())),
                             preferred_element_type=f32)          # (C, C)
        mask_f32 = mask_ref[...].astype(f32)       # block-diagonal head mask
        kv_ref[...] = (kv * mask_f32).astype(kv_ref.dtype)
        ksum_ref[...] = jnp.sum(kf, axis=0, keepdims=True)        # (1, C)

    # ---- per-L-tile work ------------------------------------------------------
    x = x_ref[...]                                  # (TL, C) f32
    xm = x.astype(md)

    q = jnp.dot(xm, wq_ref[...], preferred_element_type=f32)      # (TL, C)
    qf = _elu_p1(q)                                                # f32

    # numerator: Qf @ (block-diagonal KV), one full-width MXU matmul
    num = jnp.dot(qf.astype(md), kv_ref[...], preferred_element_type=f32)
    # normalizer: per-head Qf . Ksum, lane-dense, kept fully in f32
    zden = jnp.dot(qf * ksum_ref[...], mask_ref[...].astype(f32),
                   preferred_element_type=f32) + eps_attn          # (TL, C)
    msg = num * pl.reciprocal(zden, approx=True) * s_len

    # merge + norm1
    msg = jnp.dot(msg.astype(md), wmerge_ref[...], preferred_element_type=f32)
    msg = _layer_norm_fused(msg, ln1w_ref[...], ln1b_ref[...])

    # MLP: concat([x, msg]) @ W1^T  ==  x @ W1a^T + msg @ W1b^T  (no concat)
    hdn = (jnp.dot(xm, w1a_ref[...], preferred_element_type=f32) +
           jnp.dot(msg.astype(md), w1b_ref[...], preferred_element_type=f32))
    hdn = jnp.maximum(hdn, 0.0)
    msg = jnp.dot(hdn.astype(md), w2_ref[...], preferred_element_type=f32)
    msg = _layer_norm_fused(msg, ln2w_ref[...], ln2b_ref[...])

    out_ref[...] = (x + msg).astype(out_ref.dtype)


def self_encoder_layer(x, source, x_pose, params, nhead, *,
                       matmul_dtype=jnp.float32, tile_l=512):
    """Pallas forward of SelfEncoderLayer.  matmul_dtype=bf16 for v6e/v7x."""
    N, L, C = x.shape
    S = source.shape[1]
    D = C // nhead
    md = jnp.dtype(matmul_dtype)
    f32 = jnp.float32

    (wq, wk, wkp, wv, wmerge, ln1w, ln1b, w1, w2, ln2w, ln2b) = params

    # Pre-transpose all weights once on the host; cast MXU operands to md.
    wq_t = wq.T.astype(md)
    wk_t = wk.T.astype(md)
    wkp_t = wkp.T.astype(md)
    wv_t = wv.T.astype(md)
    wmerge_t = wmerge.T.astype(md)
    w1_t = w1.T.astype(md)                 # (2C, 2C)
    w1a_t = w1_t[:C]                       # multiplies x        (C, 2C)
    w1b_t = w1_t[C:]                       # multiplies message  (C, 2C)
    w2_t = w2.T.astype(md)                 # (2C, C)

    # LayerNorm params stay f32 (elementwise path), presented as (1, C) tiles.
    ln1w_2 = ln1w.reshape(1, C).astype(f32)
    ln1b_2 = ln1b.reshape(1, C).astype(f32)
    ln2w_2 = ln2w.reshape(1, C).astype(f32)
    ln2b_2 = ln2b.reshape(1, C).astype(f32)

    # Block-diagonal head mask (host constant): M[c, c'] = 1 iff same head.
    head_id = jnp.arange(C, dtype=jnp.int32) // D
    mask = (head_id[:, None] == head_id[None, :]).astype(md)       # (C, C)

    # L tiling: bound VMEM, let BlockSpec pipeline x/out DMAs behind compute.
    if L > tile_l:
        TL = max(8, (tile_l // 8) * 8)
    else:
        TL = L
    num_l = pl.cdiv(L, TL)

    kernel = functools.partial(_self_encoder_kernel,
                               s_len=float(S), matmul_dtype=md)

    def x_spec():
        return pl.BlockSpec((None, TL, C), lambda b, l: (b, l, 0))

    def src_spec():
        # block index is independent of l -> DMA'd once per batch element
        return pl.BlockSpec((None, S, C), lambda b, l: (b, 0, 0))

    def full2d(a):
        return pl.BlockSpec(a.shape, lambda b, l: (0, 0))

    # Rough VMEM budget (double-buffered tiles + weights + scratch) with
    # headroom, clamped to a range safe on v5e/v6e (128 MiB) and v7x (64 MiB).
    wbytes = sum(int(a.size) * a.dtype.itemsize for a in
                 (mask, wq_t, wk_t, wkp_t, wv_t, wmerge_t,
                  w1a_t, w1b_t, w2_t, ln1w_2, ln1b_2, ln2w_2, ln2b_2))
    abytes = (2 * TL * C + 2 * S * C) * 4
    sbytes = C * C * md.itemsize + C * 4
    vmem_est = 2 * (wbytes + abytes) + sbytes
    vmem_limit = int(min(max(2 * vmem_est + (4 << 20), 32 << 20), 56 << 20))

    out = pl.pallas_call(
        kernel,
        out_shape=jax.ShapeDtypeStruct((N, L, C), jnp.float32),
        grid=(N, num_l),
        in_specs=[
            x_spec(), src_spec(), src_spec(), full2d(mask),
            full2d(wq_t), full2d(wk_t), full2d(wkp_t), full2d(wv_t),
            full2d(wmerge_t),
            full2d(ln1w_2), full2d(ln1b_2),
            full2d(w1a_t), full2d(w1b_t), full2d(w2_t),
            full2d(ln2w_2), full2d(ln2b_2),
        ],
        out_specs=pl.BlockSpec((None, TL, C), lambda b, l: (b, l, 0)),
        scratch_shapes=[
            pltpu.VMEM((C, C), md),      # masked KV, cached per batch element
            pltpu.VMEM((1, C), f32),     # per-channel key sums
        ],
        compiler_params=pltpu.CompilerParams(
            dimension_semantics=("parallel", "arbitrary"),
            vmem_limit_bytes=vmem_limit),
    )(x, source, x_pose, mask,
      wq_t, wk_t, wkp_t, wv_t, wmerge_t,
      ln1w_2, ln1b_2, w1a_t, w1b_t, w2_t, ln2w_2, ln2b_2)
    return out


def _layer_norm_ref(x, gamma, beta, eps=1e-5):
    mean = jnp.mean(x, axis=-1, keepdims=True)
    var = jnp.mean((x - mean) ** 2, axis=-1, keepdims=True)
    return (x - mean) / jnp.sqrt(var + eps) * gamma + beta


def self_encoder_layer_ref(x, source, x_pose, params, nhead):
    """Pure-JAX reference mirroring the PyTorch forward (LinearAttention)."""
    (wq, wk, wkp, wv, wmerge, ln1w, ln1b, w1, w2, ln2w, ln2b) = params
    N, L, C = x.shape
    S = source.shape[1]
    D = C // nhead

    q = (x @ wq.T).reshape(N, L, nhead, D)
    k = (source @ wk.T).reshape(N, S, nhead, D)
    kp = (x_pose @ wkp.T).reshape(N, S, nhead, D)
    v = (source @ wv.T).reshape(N, S, nhead, D)

    Q = _elu_p1(q)
    K = _elu_p1(k + kp)
    v_len = float(S)
    vals = v / v_len
    KV = jnp.einsum('nshd,nshv->nhdv', K, vals)
    Z = 1.0 / (jnp.einsum('nlhd,nhd->nlh', Q, K.sum(axis=1)) + 1e-6)
    msg = jnp.einsum('nlhd,nhdv,nlh->nlhv', Q, KV, Z) * v_len
    msg = msg.reshape(N, L, C) @ wmerge.T
    msg = _layer_norm_ref(msg, ln1w, ln1b)
    cat = jnp.concatenate([x, msg], axis=-1)
    hdn = jnp.maximum(cat @ w1.T, 0.0)
    msg = hdn @ w2.T
    msg = _layer_norm_ref(msg, ln2w, ln2b)
    return x + msg


if __name__ == "__main__":
    key = jax.random.PRNGKey(0)
    N, L, S = 2, 8, 8
    d_model, nhead = 32, 4

    keys = jax.random.split(key, 16)
    x = jax.random.normal(keys[0], (N, L, d_model), jnp.float32)
    source = jax.random.normal(keys[1], (N, S, d_model), jnp.float32)
    x_pose = jax.random.normal(keys[2], (N, S, d_model), jnp.float32)

    def w(k, shape, scale=0.1):
        return scale * jax.random.normal(k, shape, jnp.float32)

    params = (
        w(keys[3], (d_model, d_model)),          # q_proj.weight
        w(keys[4], (d_model, d_model)),          # k_proj.weight
        w(keys[5], (d_model, d_model)),          # k_pose_proj.weight
        w(keys[6], (d_model, d_model)),          # v_proj.weight
        w(keys[7], (d_model, d_model)),          # merge.weight
        jnp.ones((d_model,), jnp.float32),       # norm1.weight
        jnp.zeros((d_model,), jnp.float32),      # norm1.bias
        w(keys[8], (2 * d_model, 2 * d_model)),  # mlp[0].weight
        w(keys[9], (d_model, 2 * d_model)),      # mlp[2].weight
        jnp.ones((d_model,), jnp.float32),       # norm2.weight
        jnp.zeros((d_model,), jnp.float32),      # norm2.bias
    )

    ref = self_encoder_layer_ref(x, source, x_pose, params, nhead)

    # f32 MXU path (v5e-friendly): tight check vs pure-JAX reference
    out_f32 = jax.block_until_ready(
        self_encoder_layer(x, source, x_pose, params, nhead,
                           matmul_dtype=jnp.float32))
    assert out_f32.shape == (N, L, d_model)
    assert jnp.allclose(out_f32, ref, rtol=1e-2, atol=1e-2), "f32 kernel mismatch"

    # bf16 MXU-operand path (v6e/v7x): f32 accumulation, f32 elementwise,
    # checked with a tolerance appropriate for bf16 matmul inputs.
    out_bf16 = jax.block_until_ready(
        self_encoder_layer(x, source, x_pose, params, nhead,
                           matmul_dtype=jnp.bfloat16))
    assert jnp.allclose(out_bf16, ref, rtol=1e-1, atol=1e-1), "bf16 kernel mismatch"

    print("KERNEL_OK")
</pallas_src>

<mosaic_0001>
module attributes {stable_mosaic.version = 11 : i64} {
  func.func @_self_encoder_kernel(%arg0: i32, %arg1: i32, %arg2: memref<1x8x32xf32, #tpu.memory_space<vmem>>, %arg3: memref<1x8x32xf32, #tpu.memory_space<vmem>>, %arg4: memref<1x8x32xf32, #tpu.memory_space<vmem>>, %arg5: memref<32x32xf32, #tpu.memory_space<vmem>>, %arg6: memref<32x32xf32, #tpu.memory_space<vmem>>, %arg7: memref<32x32xf32, #tpu.memory_space<vmem>>, %arg8: memref<32x32xf32, #tpu.memory_space<vmem>>, %arg9: memref<32x32xf32, #tpu.memory_space<vmem>>, %arg10: memref<32x32xf32, #tpu.memory_space<vmem>>, %arg11: memref<1x32xf32, #tpu.memory_space<vmem>>, %arg12: memref<1x32xf32, #tpu.memory_space<vmem>>, %arg13: memref<32x64xf32, #tpu.memory_space<vmem>>, %arg14: memref<32x64xf32, #tpu.memory_space<vmem>>, %arg15: memref<64x32xf32, #tpu.memory_space<vmem>>, %arg16: memref<1x32xf32, #tpu.memory_space<vmem>>, %arg17: memref<1x32xf32, #tpu.memory_space<vmem>>, %arg18: memref<1x8x32xf32, #tpu.memory_space<vmem>>, %arg19: memref<32x32xf32, #tpu.memory_space<vmem>>, %arg20: memref<1x32xf32, #tpu.memory_space<vmem>>) attributes {dimension_semantics = [#tpu.dimension_semantics<parallel>, #tpu.dimension_semantics<arbitrary>], iteration_bounds = array<i64: 2, 1>, scalar_prefetch = 0 : i64, scratch_operands = 2 : i64, tpu.core_type = #tpu.core_type<tc>, window_params = [{transform_indices = @transform_0, window_bounds = array<i64: 1, 8, 32>}, {transform_indices = @transform_1, window_bounds = array<i64: 1, 8, 32>}, {transform_indices = @transform_2, window_bounds = array<i64: 1, 8, 32>}, {pipeline_mode = #tpu.pipeline_mode<synchronous>, transform_indices = @transform_3, window_bounds = array<i64: 32, 32>}, {pipeline_mode = #tpu.pipeline_mode<synchronous>, transform_indices = @transform_4, window_bounds = array<i64: 32, 32>}, {pipeline_mode = #tpu.pipeline_mode<synchronous>, transform_indices = @transform_5, window_bounds = array<i64: 32, 32>}, {pipeline_mode = #tpu.pipeline_mode<synchronous>, transform_indices = @transform_6, window_bounds = array<i64: 32, 32>}, {pipeline_mode = #tpu.pipeline_mode<synchronous>, transform_indices = @transform_7, window_bounds = array<i64: 32, 32>}, {pipeline_mode = #tpu.pipeline_mode<synchronous>, transform_indices = @transform_8, window_bounds = array<i64: 32, 32>}, {pipeline_mode = #tpu.pipeline_mode<synchronous>, transform_indices = @transform_9, window_bounds = array<i64: 1, 32>}, {pipeline_mode = #tpu.pipeline_mode<synchronous>, transform_indices = @transform_10, window_bounds = array<i64: 1, 32>}, {pipeline_mode = #tpu.pipeline_mode<synchronous>, transform_indices = @transform_11, window_bounds = array<i64: 32, 64>}, {pipeline_mode = #tpu.pipeline_mode<synchronous>, transform_indices = @transform_12, window_bounds = array<i64: 32, 64>}, {pipeline_mode = #tpu.pipeline_mode<synchronous>, transform_indices = @transform_13, window_bounds = array<i64: 64, 32>}, {pipeline_mode = #tpu.pipeline_mode<synchronous>, transform_indices = @transform_14, window_bounds = array<i64: 1, 32>}, {pipeline_mode = #tpu.pipeline_mode<synchronous>, transform_indices = @transform_15, window_bounds = array<i64: 1, 32>}, {transform_indices = @transform_16, window_bounds = array<i64: 1, 8, 32>}]} {
    %c0_i32 = arith.constant 0 : i32
    %0 = arith.cmpi eq, %arg1, %c0_i32 : i32
    %1 = arith.extui %0 : i1 to i32
    %c0_i32_0 = arith.constant 0 : i32
    %2 = arith.cmpi ne, %1, %c0_i32_0 : i32
    scf.if %2 {
      %c0_53 = arith.constant 0 : index
      %c0_54 = arith.constant 0 : index
      %c0_55 = arith.constant 0 : index
      %93 = vector.load %arg3[%c0_53, %c0_54, %c0_55] : memref<1x8x32xf32, #tpu.memory_space<vmem>>, vector<1x8x32xf32>
      %94 = vector.shape_cast %93 : vector<1x8x32xf32> to vector<8x32xf32>
      %c0_56 = arith.constant 0 : index
      %c0_57 = arith.constant 0 : index
      %c0_58 = arith.constant 0 : index
      %95 = vector.load %arg4[%c0_56, %c0_57, %c0_58] : memref<1x8x32xf32, #tpu.memory_space<vmem>>, vector<1x8x32xf32>
      %96 = vector.shape_cast %95 : vector<1x8x32xf32> to vector<8x32xf32>
      %c0_59 = arith.constant 0 : index
      %c0_60 = arith.constant 0 : index
      %97 = vector.load %arg7[%c0_59, %c0_60] : memref<32x32xf32, #tpu.memory_space<vmem>>, vector<32x32xf32>
      %cst_61 = arith.constant dense<0.000000e+00> : vector<8x32xf32>
      %98 = tpu.matmul %94, %97, %cst_61 {dimension_numbers = #tpu.dot_dimension_numbers<[1], [0], [0], [1], [0, 0, 1, 1], [], []>} : vector<8x32xf32>, vector<32x32xf32>, vector<8x32xf32> -> vector<8x32xf32>
      %c0_62 = arith.constant 0 : index
      %c0_63 = arith.constant 0 : index
      %99 = vector.load %arg8[%c0_62, %c0_63] : memref<32x32xf32, #tpu.memory_space<vmem>>, vector<32x32xf32>
      %cst_64 = arith.constant dense<0.000000e+00> : vector<8x32xf32>
      %100 = tpu.matmul %96, %99, %cst_64 {dimension_numbers = #tpu.dot_dimension_numbers<[1], [0], [0], [1], [0, 0, 1, 1], [], []>} : vector<8x32xf32>, vector<32x32xf32>, vector<8x32xf32> -> vector<8x32xf32>
      %c0_65 = arith.constant 0 : index
      %c0_66 = arith.constant 0 : index
      %101 = vector.load %arg9[%c0_65, %c0_66] : memref<32x32xf32, #tpu.memory_space<vmem>>, vector<32x32xf32>
      %cst_67 = arith.constant dense<0.000000e+00> : vector<8x32xf32>
      %102 = tpu.matmul %94, %101, %cst_67 {dimension_numbers = #tpu.dot_dimension_numbers<[1], [0], [0], [1], [0, 0, 1, 1], [], []>} : vector<8x32xf32>, vector<32x32xf32>, vector<8x32xf32> -> vector<8x32xf32>
      %103 = arith.addf %98, %100 : vector<8x32xf32>
      %cst_68 = arith.constant 0.000000e+00 : f32
      %104 = vector.broadcast %cst_68 : f32 to vector<8x32xf32>
      %105 = arith.cmpf ogt, %103, %104 : vector<8x32xf32>
      %cst_69 = arith.constant 1.000000e+00 : f32
      %106 = vector.broadcast %cst_69 : f32 to vector<8x32xf32>
      %107 = arith.addf %103, %106 : vector<8x32xf32>
      %108 = math.exp %103 : vector<8x32xf32>
      %109 = arith.select %105, %107, %108 : vector<8x32xi1>, vector<8x32xf32>
      %cst_70 = arith.constant 1.250000e-01 : f32
      %110 = vector.broadcast %cst_70 : f32 to vector<8x32xf32>
      %111 = arith.mulf %102, %110 : vector<8x32xf32>
      %cst_71 = arith.constant dense<0.000000e+00> : vector<32x32xf32>
      %112 = tpu.matmul %109, %111, %cst_71 {dimension_numbers = #tpu.dot_dimension_numbers<[0], [0], [1], [1], [0, 1, 1, 1], [], []>} : vector<8x32xf32>, vector<8x32xf32>, vector<32x32xf32> -> vector<32x32xf32>
      %c0_72 = arith.constant 0 : index
      %c0_73 = arith.constant 0 : index
      %113 = vector.load %arg5[%c0_72, %c0_73] : memref<32x32xf32, #tpu.memory_space<vmem>>, vector<32x32xf32>
      %114 = arith.mulf %112, %113 : vector<32x32xf32>
      %c0_74 = arith.constant 0 : index
      %c0_75 = arith.constant 0 : index
      %115 = vector.load %arg19[%c0_74, %c0_75] : memref<32x32xf32, #tpu.memory_space<vmem>>, vector<32x32xf32>
      tpu.vector_store %arg19[%c0_74, %c0_75], %114 {strides = array<i32>} : memref<32x32xf32, #tpu.memory_space<vmem>>, vector<32x32xf32>,
      %cst_76 = arith.constant dense<0.000000e+00> : vector<32xf32>
      %116 = vector.multi_reduction <add>, %109, %cst_76 [0] : vector<8x32xf32> to vector<32xf32>
      %117 = vector.shape_cast %116 : vector<32xf32> to vector<1x32xf32>
      %c0_77 = arith.constant 0 : index
      %c0_78 = arith.constant 0 : index
      %118 = vector.load %arg20[%c0_77, %c0_78] : memref<1x32xf32, #tpu.memory_space<vmem>>, vector<1x32xf32>
      tpu.vector_store %arg20[%c0_77, %c0_78], %117 {strides = array<i32>} : memref<1x32xf32, #tpu.memory_space<vmem>>, vector<1x32xf32>,
    } else {
    }
    %c0 = arith.constant 0 : index
    %c0_1 = arith.constant 0 : index
    %c0_2 = arith.constant 0 : index
    %3 = vector.load %arg2[%c0, %c0_1, %c0_2] : memref<1x8x32xf32, #tpu.memory_space<vmem>>, vector<1x8x32xf32>
    %4 = vector.shape_cast %3 : vector<1x8x32xf32> to vector<8x32xf32>
    %c0_3 = arith.constant 0 : index
    %c0_4 = arith.constant 0 : index
    %5 = vector.load %arg6[%c0_3, %c0_4] : memref<32x32xf32, #tpu.memory_space<vmem>>, vector<32x32xf32>
    %cst = arith.constant dense<0.000000e+00> : vector<8x32xf32>
    %6 = tpu.matmul %4, %5, %cst {dimension_numbers = #tpu.dot_dimension_numbers<[1], [0], [0], [1], [0, 0, 1, 1], [], []>} : vector<8x32xf32>, vector<32x32xf32>, vector<8x32xf32> -> vector<8x32xf32>
    %cst_5 = arith.constant 0.000000e+00 : f32
    %7 = vector.broadcast %cst_5 : f32 to vector<8x32xf32>
    %8 = arith.cmpf ogt, %6, %7 : vector<8x32xf32>
    %cst_6 = arith.constant 1.000000e+00 : f32
    %9 = vector.broadcast %cst_6 : f32 to vector<8x32xf32>
    %10 = arith.addf %6, %9 : vector<8x32xf32>
    %11 = math.exp %6 : vector<8x32xf32>
    %12 = arith.select %8, %10, %11 : vector<8x32xi1>, vector<8x32xf32>
    %c0_7 = arith.constant 0 : index
    %c0_8 = arith.constant 0 : index
    %13 = vector.load %arg19[%c0_7, %c0_8] : memref<32x32xf32, #tpu.memory_space<vmem>>, vector<32x32xf32>
    %cst_9 = arith.constant dense<0.000000e+00> : vector<8x32xf32>
    %14 = tpu.matmul %12, %13, %cst_9 {dimension_numbers = #tpu.dot_dimension_numbers<[1], [0], [0], [1], [0, 0, 1, 1], [], []>} : vector<8x32xf32>, vector<32x32xf32>, vector<8x32xf32> -> vector<8x32xf32>
    %c0_10 = arith.constant 0 : index
    %c0_11 = arith.constant 0 : index
    %15 = vector.load %arg20[%c0_10, %c0_11] : memref<1x32xf32, #tpu.memory_space<vmem>>, vector<1x32xf32>
    %16 = vector.broadcast %15 : vector<1x32xf32> to vector<8x32xf32>
    %17 = arith.mulf %12, %16 : vector<8x32xf32>
    %c0_12 = arith.constant 0 : index
    %c0_13 = arith.constant 0 : index
    %18 = vector.load %arg5[%c0_12, %c0_13] : memref<32x32xf32, #tpu.memory_space<vmem>>, vector<32x32xf32>
    %cst_14 = arith.constant dense<0.000000e+00> : vector<8x32xf32>
    %19 = tpu.matmul %17, %18, %cst_14 {dimension_numbers = #tpu.dot_dimension_numbers<[1], [0], [0], [1], [0, 0, 1, 1], [], []>} : vector<8x32xf32>, vector<32x32xf32>, vector<8x32xf32> -> vector<8x32xf32>
    %cst_15 = arith.constant 9.99999997E-7 : f32
    %20 = vector.broadcast %cst_15 : f32 to vector<8x32xf32>
    %21 = arith.addf %19, %20 : vector<8x32xf32>
    %22 = tpu.reciprocal %21 {approx = true} : vector<8x32xf32> -> vector<8x32xf32>
    %23 = arith.mulf %14, %22 : vector<8x32xf32>
    %cst_16 = arith.constant 8.000000e+00 : f32
    %24 = vector.broadcast %cst_16 : f32 to vector<8x32xf32>
    %25 = arith.mulf %23, %24 : vector<8x32xf32>
    %c0_17 = arith.constant 0 : index
    %c0_18 = arith.constant 0 : index
    %26 = vector.load %arg10[%c0_17, %c0_18] : memref<32x32xf32, #tpu.memory_space<vmem>>, vector<32x32xf32>
    %cst_19 = arith.constant dense<0.000000e+00> : vector<8x32xf32>
    %27 = tpu.matmul %25, %26, %cst_19 {dimension_numbers = #tpu.dot_dimension_numbers<[1], [0], [0], [1], [0, 0, 1, 1], [], []>} : vector<8x32xf32>, vector<32x32xf32>, vector<8x32xf32> -> vector<8x32xf32>
    %c0_20 = arith.constant 0 : index
    %c0_21 = arith.constant 0 : index
    %28 = vector.load %arg11[%c0_20, %c0_21] : memref<1x32xf32, #tpu.memory_space<vmem>>, vector<1x32xf32>
    %c0_22 = arith.constant 0 : index
    %c0_23 = arith.constant 0 : index
    %29 = vector.load %arg12[%c0_22, %c0_23] : memref<1x32xf32, #tpu.memory_space<vmem>>, vector<1x32xf32>
    %cst_24 = arith.constant dense<0.000000e+00> : vector<8xf32>
    %30 = vector.multi_reduction <add>, %27, %cst_24 [1] : vector<8x32xf32> to vector<8xf32>
    %31 = vector.shape_cast %30 : vector<8xf32> to vector<8x1xf32>
    %cst_25 = arith.constant 3.200000e+01 : f32
    %32 = vector.broadcast %cst_25 : f32 to vector<8x1xf32>
    %33 = arith.divf %31, %32 : vector<8x1xf32>
    %34 = arith.mulf %27, %27 : vector<8x32xf32>
    %cst_26 = arith.constant dense<0.000000e+00> : vector<8xf32>
    %35 = vector.multi_reduction <add>, %34, %cst_26 [1] : vector<8x32xf32> to vector<8xf32>
    %36 = vector.shape_cast %35 : vector<8xf32> to vector<8x1xf32>
    %cst_27 = arith.constant 3.200000e+01 : f32
    %37 = vector.broadcast %cst_27 : f32 to vector<8x1xf32>
    %38 = arith.divf %36, %37 : vector<8x1xf32>
    %39 = arith.mulf %33, %33 : vector<8x1xf32>
    %40 = arith.subf %38, %39 : vector<8x1xf32>
    %cst_28 = arith.constant 0.000000e+00 : f32
    %41 = vector.broadcast %cst_28 : f32 to vector<8x1xf32>
    %42 = arith.maximumf %40, %41 : vector<8x1xf32>
    %43 = vector.broadcast %33 : vector<8x1xf32> to vector<8x32xf32>
    %44 = arith.subf %27, %43 : vector<8x32xf32>
    %cst_29 = arith.constant 9.99999974E-6 : f32
    %45 = vector.broadcast %cst_29 : f32 to vector<8x1xf32>
    %46 = arith.addf %42, %45 : vector<8x1xf32>
    %47 = math.rsqrt %46 : vector<8x1xf32>
    %48 = vector.broadcast %47 : vector<8x1xf32> to vector<8x32xf32>
    %49 = arith.mulf %44, %48 : vector<8x32xf32>
    %50 = vector.broadcast %28 : vector<1x32xf32> to vector<8x32xf32>
    %51 = arith.mulf %49, %50 : vector<8x32xf32>
    %52 = vector.broadcast %29 : vector<1x32xf32> to vector<8x32xf32>
    %53 = arith.addf %51, %52 : vector<8x32xf32>
    %c0_30 = arith.constant 0 : index
    %c0_31 = arith.constant 0 : index
    %54 = vector.load %arg13[%c0_30, %c0_31] : memref<32x64xf32, #tpu.memory_space<vmem>>, vector<32x64xf32>
    %cst_32 = arith.constant dense<0.000000e+00> : vector<8x64xf32>
    %55 = tpu.matmul %4, %54, %cst_32 {dimension_numbers = #tpu.dot_dimension_numbers<[1], [0], [0], [1], [0, 0, 1, 1], [], []>} : vector<8x32xf32>, vector<32x64xf32>, vector<8x64xf32> -> vector<8x64xf32>
    %c0_33 = arith.constant 0 : index
    %c0_34 = arith.constant 0 : index
    %56 = vector.load %arg14[%c0_33, %c0_34] : memref<32x64xf32, #tpu.memory_space<vmem>>, vector<32x64xf32>
    %cst_35 = arith.constant dense<0.000000e+00> : vector<8x64xf32>
    %57 = tpu.matmul %53, %56, %cst_35 {dimension_numbers = #tpu.dot_dimension_numbers<[1], [0], [0], [1], [0, 0, 1, 1], [], []>} : vector<8x32xf32>, vector<32x64xf32>, vector<8x64xf32> -> vector<8x64xf32>
    %58 = arith.addf %55, %57 : vector<8x64xf32>
    %cst_36 = arith.constant 0.000000e+00 : f32
    %59 = vector.broadcast %cst_36 : f32 to vector<8x64xf32>
    %60 = arith.maximumf %58, %59 : vector<8x64xf32>
    %c0_37 = arith.constant 0 : index
    %c0_38 = arith.constant 0 : index
    %61 = vector.load %arg15[%c0_37, %c0_38] : memref<64x32xf32, #tpu.memory_space<vmem>>, vector<64x32xf32>
    %cst_39 = arith.constant dense<0.000000e+00> : vector<8x32xf32>
    %62 = tpu.matmul %60, %61, %cst_39 {dimension_numbers = #tpu.dot_dimension_numbers<[1], [0], [0], [1], [0, 0, 1, 1], [], []>} : vector<8x64xf32>, vector<64x32xf32>, vector<8x32xf32> -> vector<8x32xf32>
    %c0_40 = arith.constant 0 : index
    %c0_41 = arith.constant 0 : index
    %63 = vector.load %arg16[%c0_40, %c0_41] : memref<1x32xf32, #tpu.memory_space<vmem>>, vector<1x32xf32>
    %c0_42 = arith.constant 0 : index
    %c0_43 = arith.constant 0 : index
    %64 = vector.load %arg17[%c0_42, %c0_43] : memref<1x32xf32, #tpu.memory_space<vmem>>, vector<1x32xf32>
    %cst_44 = arith.constant dense<0.000000e+00> : vector<8xf32>
    %65 = vector.multi_reduction <add>, %62, %cst_44 [1] : vector<8x32xf32> to vector<8xf32>
    %66 = vector.shape_cast %65 : vector<8xf32> to vector<8x1xf32>
    %cst_45 = arith.constant 3.200000e+01 : f32
    %67 = vector.broadcast %cst_45 : f32 to vector<8x1xf32>
    %68 = arith.divf %66, %67 : vector<8x1xf32>
    %69 = arith.mulf %62, %62 : vector<8x32xf32>
    %cst_46 = arith.constant dense<0.000000e+00> : vector<8xf32>
    %70 = vector.multi_reduction <add>, %69, %cst_46 [1] : vector<8x32xf32> to vector<8xf32>
    %71 = vector.shape_cast %70 : vector<8xf32> to vector<8x1xf32>
    %cst_47 = arith.constant 3.200000e+01 : f32
    %72 = vector.broadcast %cst_47 : f32 to vector<8x1xf32>
    %73 = arith.divf %71, %72 : vector<8x1xf32>
    %74 = arith.mulf %68, %68 : vector<8x1xf32>
    %75 = arith.subf %73, %74 : vector<8x1xf32>
    %cst_48 = arith.constant 0.000000e+00 : f32
    %76 = vector.broadcast %cst_48 : f32 to vector<8x1xf32>
    %77 = arith.maximumf %75, %76 : vector<8x1xf32>
    %78 = vector.broadcast %68 : vector<8x1xf32> to vector<8x32xf32>
    %79 = arith.subf %62, %78 : vector<8x32xf32>
    %cst_49 = arith.constant 9.99999974E-6 : f32
    %80 = vector.broadcast %cst_49 : f32 to vector<8x1xf32>
    %81 = arith.addf %77, %80 : vector<8x1xf32>
    %82 = math.rsqrt %81 : vector<8x1xf32>
    %83 = vector.broadcast %82 : vector<8x1xf32> to vector<8x32xf32>
    %84 = arith.mulf %79, %83 : vector<8x32xf32>
    %85 = vector.broadcast %63 : vector<1x32xf32> to vector<8x32xf32>
    %86 = arith.mulf %84, %85 : vector<8x32xf32>
    %87 = vector.broadcast %64 : vector<1x32xf32> to vector<8x32xf32>
    %88 = arith.addf %86, %87 : vector<8x32xf32>
    %89 = arith.addf %4, %88 : vector<8x32xf32>
    %c0_50 = arith.constant 0 : index
    %c0_51 = arith.constant 0 : index
    %c0_52 = arith.constant 0 : index
    %90 = vector.load %arg18[%c0_50, %c0_51, %c0_52] : memref<1x8x32xf32, #tpu.memory_space<vmem>>, vector<1x8x32xf32>
    %91 = vector.shape_cast %90 : vector<1x8x32xf32> to vector<8x32xf32>
    %92 = vector.shape_cast %89 : vector<8x32xf32> to vector<1x8x32xf32>
    tpu.vector_store %arg18[%c0_50, %c0_51, %c0_52], %92 {strides = array<i32>} : memref<1x8x32xf32, #tpu.memory_space<vmem>>, vector<1x8x32xf32>,
    return
  }
  func.func @transform_0(%arg0: i32, %arg1: i32) -> (i32, i32, i32) {
    %c0_i32 = arith.constant 0 : i32
    %c0_i32_0 = arith.constant 0 : i32
    return %arg0, %arg1, %c0_i32 : i32, i32, i32
  }
  func.func @transform_1(%arg0: i32, %arg1: i32) -> (i32, i32, i32) {
    %c0_i32 = arith.constant 0 : i32
    %c0_i32_0 = arith.constant 0 : i32
    %c0_i32_1 = arith.constant 0 : i32
    return %arg0, %c0_i32, %c0_i32_0 : i32, i32, i32
  }
  func.func @transform_2(%arg0: i32, %arg1: i32) -> (i32, i32, i32) {
    %c0_i32 = arith.constant 0 : i32
    %c0_i32_0 = arith.constant 0 : i32
    %c0_i32_1 = arith.constant 0 : i32
    return %arg0, %c0_i32, %c0_i32_0 : i32, i32, i32
  }
  func.func @transform_3(%arg0: i32, %arg1: i32) -> (i32, i32) {
    %c0_i32 = arith.constant 0 : i32
    %c0_i32_0 = arith.constant 0 : i32
    %c0_i32_1 = arith.constant 0 : i32
    return %c0_i32, %c0_i32_0 : i32, i32
  }
  func.func @transform_4(%arg0: i32, %arg1: i32) -> (i32, i32) {
    %c0_i32 = arith.constant 0 : i32
    %c0_i32_0 = arith.constant 0 : i32
    %c0_i32_1 = arith.constant 0 : i32
    return %c0_i32, %c0_i32_0 : i32, i32
  }
  func.func @transform_5(%arg0: i32, %arg1: i32) -> (i32, i32) {
    %c0_i32 = arith.constant 0 : i32
    %c0_i32_0 = arith.constant 0 : i32
    %c0_i32_1 = arith.constant 0 : i32
    return %c0_i32, %c0_i32_0 : i32, i32
  }
  func.func @transform_6(%arg0: i32, %arg1: i32) -> (i32, i32) {
    %c0_i32 = arith.constant 0 : i32
    %c0_i32_0 = arith.constant 0 : i32
    %c0_i32_1 = arith.constant 0 : i32
    return %c0_i32, %c0_i32_0 : i32, i32
  }
  func.func @transform_7(%arg0: i32, %arg1: i32) -> (i32, i32) {
    %c0_i32 = arith.constant 0 : i32
    %c0_i32_0 = arith.constant 0 : i32
    %c0_i32_1 = arith.constant 0 : i32
    return %c0_i32, %c0_i32_0 : i32, i32
  }
  func.func @transform_8(%arg0: i32, %arg1: i32) -> (i32, i32) {
    %c0_i32 = arith.constant 0 : i32
    %c0_i32_0 = arith.constant 0 : i32
    %c0_i32_1 = arith.constant 0 : i32
    return %c0_i32, %c0_i32_0 : i32, i32
  }
  func.func @transform_9(%arg0: i32, %arg1: i32) -> (i32, i32) {
    %c0_i32 = arith.constant 0 : i32
    %c0_i32_0 = arith.constant 0 : i32
    %c0_i32_1 = arith.constant 0 : i32
    return %c0_i32, %c0_i32_0 : i32, i32
  }
  func.func @transform_10(%arg0: i32, %arg1: i32) -> (i32, i32) {
    %c0_i32 = arith.constant 0 : i32
    %c0_i32_0 = arith.constant 0 : i32
    %c0_i32_1 = arith.constant 0 : i32
    return %c0_i32, %c0_i32_0 : i32, i32
  }
  func.func @transform_11(%arg0: i32, %arg1: i32) -> (i32, i32) {
    %c0_i32 = arith.constant 0 : i32
    %c0_i32_0 = arith.constant 0 : i32
    %c0_i32_1 = arith.constant 0 : i32
    return %c0_i32, %c0_i32_0 : i32, i32
  }
  func.func @transform_12(%arg0: i32, %arg1: i32) -> (i32, i32) {
    %c0_i32 = arith.constant 0 : i32
    %c0_i32_0 = arith.constant 0 : i32
    %c0_i32_1 = arith.constant 0 : i32
    return %c0_i32, %c0_i32_0 : i32, i32
  }
  func.func @transform_13(%arg0: i32, %arg1: i32) -> (i32, i32) {
    %c0_i32 = arith.constant 0 : i32
    %c0_i32_0 = arith.constant 0 : i32
    %c0_i32_1 = arith.constant 0 : i32
    return %c0_i32, %c0_i32_0 : i32, i32
  }
  func.func @transform_14(%arg0: i32, %arg1: i32) -> (i32, i32) {
    %c0_i32 = arith.constant 0 : i32
    %c0_i32_0 = arith.constant 0 : i32
    %c0_i32_1 = arith.constant 0 : i32
    return %c0_i32, %c0_i32_0 : i32, i32
  }
  func.func @transform_15(%arg0: i32, %arg1: i32) -> (i32, i32) {
    %c0_i32 = arith.constant 0 : i32
    %c0_i32_0 = arith.constant 0 : i32
    %c0_i32_1 = arith.constant 0 : i32
    return %c0_i32, %c0_i32_0 : i32, i32
  }
  func.func @transform_16(%arg0: i32, %arg1: i32) -> (i32, i32, i32) {
    %c0_i32 = arith.constant 0 : i32
    %c0_i32_0 = arith.constant 0 : i32
    return %arg0, %arg1, %c0_i32 : i32, i32, i32
  }
}

</mosaic_0001>

<llo_original>
// kernel: tpu_custom_call.1
$region0: #{tpu_custom_call.1}
  #allocation0 [shape = 'u32[]', space=smem, size = 0x4, offset = 0x4, fixed_abs, tag = 'smem constant byte address 0x4 - core index']
  #allocation1 [shape = 'u32[144,128]{1,0:T(1,128)}', space=vmem, size = 0x12000, scoped, tag = 'internal scratch']
  #allocation2 [shape = 'f32[32,32]{1,0:T(8,128)}', space=vmem, size = 0x4000, scoped, tag = 'scratch operand']
  #allocation3 [shape = 'f32[1,32]{1,0:T(1,128)}', space=vmem, size = 0x200, scoped, tag = 'scratch operand']
  %s0 = inlined_call_operand.hbm [shape: f32[2,8,32], index: 0, kind: input, shape index: {}]
  %s1 = inlined_call_operand.hbm [shape: f32[2,8,32], index: 1, kind: input, shape index: {}]
  %s2 = inlined_call_operand.hbm [shape: f32[2,8,32], index: 2, kind: input, shape index: {}]
  %s3 = inlined_call_operand.vmem [shape: f32[32,32], index: 3, kind: input, shape index: {}]
  %s4 = inlined_call_operand.vmem [shape: f32[32,32], index: 4, kind: input, shape index: {}]
  %s5 = inlined_call_operand.vmem [shape: f32[32,32], index: 5, kind: input, shape index: {}]
  %s6 = inlined_call_operand.hbm [shape: f32[32,32], index: 6, kind: input, shape index: {}]
  %s7 = inlined_call_operand.hbm [shape: f32[32,32], index: 7, kind: input, shape index: {}]
  %s8 = inlined_call_operand.hbm [shape: f32[32,32], index: 8, kind: input, shape index: {}]
  %s9 = inlined_call_operand.vmem [shape: f32[1,32], index: 9, kind: input, shape index: {}]
  %s10 = inlined_call_operand.vmem [shape: f32[1,32], index: 10, kind: input, shape index: {}]
  %s11 = inlined_call_operand.hbm [shape: f32[32,64], index: 11, kind: input, shape index: {}]
  %s12 = inlined_call_operand.hbm [shape: f32[32,64], index: 12, kind: input, shape index: {}]
  %s13 = inlined_call_operand.vmem [shape: f32[64,32], index: 13, kind: input, shape index: {}]
  %s14 = inlined_call_operand.vmem [shape: f32[1,32], index: 14, kind: input, shape index: {}]
  %s15 = inlined_call_operand.vmem [shape: f32[1,32], index: 15, kind: input, shape index: {}]
  %s16 = inlined_call_operand.hbm [shape: f32[2,8,32], index: 16, kind: output, shape index: {}]
  %s17 = sld [smem:[#allocation0]]
  $region133: #{tpu_custom_call.1} parent=0
    _
  %s19 = ssub.s32 1, %s17
  %s20 = scalar_select 0, %s19, %s17
  $region1: #{tpu_custom_call.1} parent=0
    #allocation4 [shape = 'u8[8192]{0}', space=vmem, size = 0x2000, scoped, tag = 'input window, operand 0']
    #allocation5 [shape = 's32[2]{0}', space=sflag, size = 0x8, scoped, tag = 'scoped memory for tpu_custom_call.1']
    #allocation6 [shape = 's32[2]{0}', space=sflag, size = 0x8, scoped, tag = 'scoped memory for tpu_custom_call.1']
    #allocation7 [shape = 'u8[8192]{0}', space=vmem, size = 0x2000, scoped, tag = 'input window, operand 1']
    #allocation8 [shape = 's32[2]{0}', space=sflag, size = 0x8, scoped, tag = 'scoped memory for tpu_custom_call.1']
    #allocation9 [shape = 'u8[8192]{0}', space=vmem, size = 0x2000, scoped, tag = 'input window, operand 2']
    #allocation10 [shape = 'u8[16384]{0}', space=vmem, size = 0x4000, scoped, tag = 'input window, operand 6, single buffered']
    #allocation11 [shape = 's32[1]{0}', space=sflag, size = 0x4, scoped, tag = 'scoped memory for tpu_custom_call.1']
    #allocation12 [shape = 'u8[16384]{0}', space=vmem, size = 0x4000, scoped, tag = 'input window, operand 7, single buffered']
    #allocation13 [shape = 'u8[16384]{0}', space=vmem, size = 0x4000, scoped, tag = 'input window, operand 8, single buffered']
    #allocation14 [shape = 's32[1]{0}', space=sflag, size = 0x4, scoped, tag = 'scoped memory for tpu_custom_call.1']
    #allocation15 [shape = 'u8[16384]{0}', space=vmem, size = 0x4000, scoped, tag = 'input window, operand 11, single buffered']
    #allocation16 [shape = 'u8[16384]{0}', space=vmem, size = 0x4000, scoped, tag = 'input window, operand 12, single buffered']
    #allocation17 [shape = 's32[1]{0}', space=sflag, size = 0x4, scoped, tag = 'scoped memory for tpu_custom_call.1']
    #allocation18 [shape = 'u8[8192]{0}', space=vmem, size = 0x2000, scoped, tag = 'output window, operand 0']
    %21 = vsyncpa [#allocation5], 0
    %s22 = scalar_lea.sflag [#allocation5], 1
    %23 = vsyncpa %s22, 0
    %24 = vsyncpa [#allocation8], 0
    %s25 = scalar_lea.sflag [#allocation8], 1
    %26 = vsyncpa %s25, 0
    %27 = vsyncpa [#allocation11], 0
    %28 = vsyncpa [#allocation14], 0
    %29 = vsyncpa [#allocation17], 0
    %30 = vsyncpa [#allocation6], 0
    %s31 = scalar_lea.sflag [#allocation6], 1
    %32 = vsyncpa %s31, 0
    loop: start=0, step=1, limit=4
    $region2: #{tpu_custom_call.1} parent=1 // loop_pre_header
      _
    $region3: #{tpu_custom_call.1} parent=1 // loop_header
      %s34 = sphi 0, %s38
      %p35 = scmp.ge.s32.totalorder %s34, 4
      %s41 = sphi 0, %s53
      %s42 = sphi 0, %s49
      %s43 = sphi 0, %s41
      %s44 = sphi 0, %s42
      %s45 = sphi 0, %s43
      %s46 = sphi 0, %s44
      %s58 = sphi 0, %s60
      %s61 = sphi 0, %s58
      %s62 = sphi 0, %s61
      %s78 = sphi 0, %s62
      %s84 = sphi 0, %s86
      %s87 = sphi 0, %s84
      %s88 = sphi 0, %s87
      %s104 = sphi 0, %s88
      %s110 = sphi 0, %s112
      %s113 = sphi 0, %s110
      %s114 = sphi 0, %s113
      %s130 = sphi 0, %s114
      %s134 = sphi 0, %s134
      %s136 = sphi 0, %s134
      %s137 = sphi 0, %s136
      %s151 = sphi 0, %s137
      %s155 = sphi 0, %s155
      %s157 = sphi 0, %s155
      %s158 = sphi 0, %s157
      %s172 = sphi 0, %s158
      %s176 = sphi 0, %s176
      %s178 = sphi 0, %s176
      %s179 = sphi 0, %s178
      %s193 = sphi 0, %s179
      %s197 = sphi 0, %s197
      %s199 = sphi 0, %s197
      %s200 = sphi 0, %s199
      %s214 = sphi 0, %s200
      %s218 = sphi 0, %s218
      %s220 = sphi 0, %s218
      %s221 = sphi 0, %s220
      %s235 = sphi 0, %s221
      %s239 = sphi 0, %s239
      %s241 = sphi 0, %s239
      %s242 = sphi 0, %s241
      %s256 = sphi 0, %s242
      %s260 = sphi 0, %s260
      %s262 = sphi 0, %s260
      %s263 = sphi 0, %s262
      %s277 = sphi 0, %s263
      %s281 = sphi 0, %s281
      %s283 = sphi 0, %s281
      %s284 = sphi 0, %s283
      %s298 = sphi 0, %s284
      %s302 = sphi 0, %s302
      %s304 = sphi 0, %s302
      %s305 = sphi 0, %s304
      %s319 = sphi 0, %s305
      %s323 = sphi 0, %s323
      %s325 = sphi 0, %s323
      %s326 = sphi 0, %s325
      %s340 = sphi 0, %s326
      %s344 = sphi 0, %s344
      %s346 = sphi 0, %s344
      %s347 = sphi 0, %s346
      %s361 = sphi 0, %s347
      %s365 = sphi 0, %s365
      %s367 = sphi 0, %s365
      %s368 = sphi 0, %s367
      %s382 = sphi 0, %s368
      %s386 = sphi 0, %s386
      %s388 = sphi 0, %s386
      %s389 = sphi 0, %s388
      %s403 = sphi 0, %s389
      %s411 = sphi 0, %s413
      %s414 = sphi 0, %s411
      %s415 = sphi 0, %s414
      %s431 = sphi 0, %s415
    $region4: #{tpu_custom_call.1} parent=1 // loop_header_branch
      %37 = sbr.rel (%p35) target = $region8
    $region5: #{tpu_custom_call.1} parent=1 // loop_body
      %s39 = ssub.s32 %s34, 1
      %s40 = ssub.s32 %s34, 2
      %s47 = sadd.s32 1, %s42
      %p48 = scmp.ge.s32.totalorder %s47, 1
      %s49 = scalar_select %p48, 0, %s47
      %s50 = sadd.s32 1, %s41
      %s51 = scalar_select %p48, %s50, %s41
      %p52 = scmp.ge.s32.totalorder %s51, 2
      %s53 = scalar_select %p52, 0, %s51
      %s54 = ssub.s32 %s41, %s53
      %s55 = ssub.s32 %s42, %s49
      %s56 = sor.u32 %s54, %s55
      %p57 = scmp.eq.s32.totalorder %s56, 0
      %s59 = sadd.s32 %s58, 1
      %s60 = scalar_select %p57, %s58, %s59
      %p63 = pneg %p57
      %p64 = scmp.eq.s32.totalorder %s34, 1
      %p65 = por %p63, %p64
      %p66 = scmp.ne.s32.totalorder %s58, %s61
      %p67 = scmp.eq.s32.totalorder %s34, 0
      %p68 = por %p66, %p67
      %p69 = scmp.ne.s32.totalorder %s58, %s61
      %p70 = scmp.eq.s32.totalorder %s39, 1
      %p71 = por %p69, %p70
      %p72 = scmp.ne.s32.totalorder %s61, %s62
      %p73 = scmp.eq.s32.totalorder %s39, 0
      %p74 = por %p72, %p73
      %p75 = scmp.ne.s32.totalorder %s61, %s62
      %p76 = scmp.eq.s32.totalorder %s40, 1
      %p77 = por %p75, %p76
      %p79 = scmp.ne.s32.totalorder %s62, %s78
      %p80 = scmp.eq.s32.totalorder %s40, 0
      %p81 = por %p79, %p80
      %s82 = ssub.s32 %s41, %s53
      %p83 = scmp.eq.s32.totalorder %s82, 0
      %s85 = sadd.s32 %s84, 1
      %s86 = scalar_select %p83, %s84, %s85
      %p89 = pneg %p83
      %p90 = scmp.eq.s32.totalorder %s34, 1
      %p91 = por %p89, %p90
      %p92 = scmp.ne.s32.totalorder %s84, %s87
      %p93 = scmp.eq.s32.totalorder %s34, 0
      %p94 = por %p92, %p93
      %p95 = scmp.ne.s32.totalorder %s84, %s87
      %p96 = scmp.eq.s32.totalorder %s39, 1
      %p97 = por %p95, %p96
      %p98 = scmp.ne.s32.totalorder %s87, %s88
      %p99 = scmp.eq.s32.totalorder %s39, 0
      %p100 = por %p98, %p99
      %p101 = scmp.ne.s32.totalorder %s87, %s88
      %p102 = scmp.eq.s32.totalorder %s40, 1
      %p103 = por %p101, %p102
      %p105 = scmp.ne.s32.totalorder %s88, %s104
      %p106 = scmp.eq.s32.totalorder %s40, 0
      %p107 = por %p105, %p106
      %s108 = ssub.s32 %s41, %s53
      %p109 = scmp.eq.s32.totalorder %s108, 0
      %s111 = sadd.s32 %s110, 1
      %s112 = scalar_select %p109, %s110, %s111
      %p115 = pneg %p109
      %p116 = scmp.eq.s32.totalorder %s34, 1
      %p117 = por %p115, %p116
      %p118 = scmp.ne.s32.totalorder %s110, %s113
      %p119 = scmp.eq.s32.totalorder %s34, 0
      %p120 = por %p118, %p119
      %p121 = scmp.ne.s32.totalorder %s110, %s113
      %p122 = scmp.eq.s32.totalorder %s39, 1
      %p123 = por %p121, %p122
      %p124 = scmp.ne.s32.totalorder %s113, %s114
      %p125 = scmp.eq.s32.totalorder %s39, 0
      %p126 = por %p124, %p125
      %p127 = scmp.ne.s32.totalorder %s113, %s114
      %p128 = scmp.eq.s32.totalorder %s40, 1
      %p129 = por %p127, %p128
      %p131 = scmp.ne.s32.totalorder %s114, %s130
      %p132 = scmp.eq.s32.totalorder %s40, 0
      %p133 = por %p131, %p132
      %s135 = sadd.s32 %s134, 1
      %p138 = scmp.eq.s32.totalorder %s34, 1
      %p139 = scmp.ne.s32.totalorder %s134, %s136
      %p140 = scmp.eq.s32.totalorder %s34, 0
      %p141 = por %p139, %p140
      %p142 = scmp.ne.s32.totalorder %s134, %s136
      %p143 = scmp.eq.s32.totalorder %s39, 1
      %p144 = por %p142, %p143
      %p145 = scmp.ne.s32.totalorder %s136, %s137
      %p146 = scmp.eq.s32.totalorder %s39, 0
      %p147 = por %p145, %p146
      %p148 = scmp.ne.s32.totalorder %s136, %s137
      %p149 = scmp.eq.s32.totalorder %s40, 1
      %p150 = por %p148, %p149
      %p152 = scmp.ne.s32.totalorder %s137, %s151
      %p153 = scmp.eq.s32.totalorder %s40, 0
      %p154 = por %p152, %p153
      %s156 = sadd.s32 %s155, 1
      %p159 = scmp.eq.s32.totalorder %s34, 1
      %p160 = scmp.ne.s32.totalorder %s155, %s157
      %p161 = scmp.eq.s32.totalorder %s34, 0
      %p162 = por %p160, %p161
      %p163 = scmp.ne.s32.totalorder %s155, %s157
      %p164 = scmp.eq.s32.totalorder %s39, 1
      %p165 = por %p163, %p164
      %p166 = scmp.ne.s32.totalorder %s157, %s158
      %p167 = scmp.eq.s32.totalorder %s39, 0
      %p168 = por %p166, %p167
      %p169 = scmp.ne.s32.totalorder %s157, %s158
      %p170 = scmp.eq.s32.totalorder %s40, 1
      %p171 = por %p169, %p170
      %p173 = scmp.ne.s32.totalorder %s158, %s172
      %p174 = scmp.eq.s32.totalorder %s40, 0
      %p175 = por %p173, %p174
      %s177 = sadd.s32 %s176, 1
      %p180 = scmp.eq.s32.totalorder %s34, 1
      %p181 = scmp.ne.s32.totalorder %s176, %s178
      %p182 = scmp.eq.s32.totalorder %s34, 0
      %p183 = por %p181, %p182
      %p184 = scmp.ne.s32.totalorder %s176, %s178
      %p185 = scmp.eq.s32.totalorder %s39, 1
      %p186 = por %p184, %p185
      %p187 = scmp.ne.s32.totalorder %s178, %s179
      %p188 = scmp.eq.s32.totalorder %s39, 0
      %p189 = por %p187, %p188
      %p190 = scmp.ne.s32.totalorder %s178, %s179
      %p191 = scmp.eq.s32.totalorder %s40, 1
      %p192 = por %p190, %p191
      %p194 = scmp.ne.s32.totalorder %s179, %s193
      %p195 = scmp.eq.s32.totalorder %s40, 0
      %p196 = por %p194, %p195
      %s198 = sadd.s32 %s197, 1
      %p201 = scmp.eq.s32.totalorder %s34, 1
      %p202 = scmp.ne.s32.totalorder %s197, %s199
      %p203 = scmp.eq.s32.totalorder %s34, 0
      %p204 = por %p202, %p203
      %p205 = scmp.ne.s32.totalorder %s197, %s199
      %p206 = scmp.eq.s32.totalorder %s39, 1
      %p207 = por %p205, %p206
      %p208 = scmp.ne.s32.totalorder %s199, %s200
      %p209 = scmp.eq.s32.totalorder %s39, 0
      %p210 = por %p208, %p209
      %p211 = scmp.ne.s32.totalorder %s199, %s200
      %p212 = scmp.eq.s32.totalorder %s40, 1
      %p213 = por %p211, %p212
      %p215 = scmp.ne.s32.totalorder %s200, %s214
      %p216 = scmp.eq.s32.totalorder %s40, 0
      %p217 = por %p215, %p216
      %s219 = sadd.s32 %s218, 1
      %p222 = scmp.eq.s32.totalorder %s34, 1
      %p223 = scmp.ne.s32.totalorder %s218, %s220
      %p224 = scmp.eq.s32.totalorder %s34, 0
      %p225 = por %p223, %p224
      %p226 = scmp.ne.s32.totalorder %s218, %s220
      %p227 = scmp.eq.s32.totalorder %s39, 1
      %p228 = por %p226, %p227
      %p229 = scmp.ne.s32.totalorder %s220, %s221
      %p230 = scmp.eq.s32.totalorder %s39, 0
      %p231 = por %p229, %p230
      %p232 = scmp.ne.s32.totalorder %s220, %s221
      %p233 = scmp.eq.s32.totalorder %s40, 1
      %p234 = por %p232, %p233
      %p236 = scmp.ne.s32.totalorder %s221, %s235
      %p237 = scmp.eq.s32.totalorder %s40, 0
      %p238 = por %p236, %p237
      %s240 = sadd.s32 %s239, 1
      %p243 = scmp.eq.s32.totalorder %s34, 1
      %p244 = scmp.ne.s32.totalorder %s239, %s241
      %p245 = scmp.eq.s32.totalorder %s34, 0
      %p246 = por %p244, %p245
      %p247 = scmp.ne.s32.totalorder %s239, %s241
      %p248 = scmp.eq.s32.totalorder %s39, 1
      %p249 = por %p247, %p248
      %p250 = scmp.ne.s32.totalorder %s241, %s242
      %p251 = scmp.eq.s32.totalorder %s39, 0
      %p252 = por %p250, %p251
      %p253 = scmp.ne.s32.totalorder %s241, %s242
      %p254 = scmp.eq.s32.totalorder %s40, 1
      %p255 = por %p253, %p254
      %p257 = scmp.ne.s32.totalorder %s242, %s256
      %p258 = scmp.eq.s32.totalorder %s40, 0
      %p259 = por %p257, %p258
      %s261 = sadd.s32 %s260, 1
      %p264 = scmp.eq.s32.totalorder %s34, 1
      %p265 = scmp.ne.s32.totalorder %s260, %s262
      %p266 = scmp.eq.s32.totalorder %s34, 0
      %p267 = por %p265, %p266
      %p268 = scmp.ne.s32.totalorder %s260, %s262
      %p269 = scmp.eq.s32.totalorder %s39, 1
      %p270 = por %p268, %p269
      %p271 = scmp.ne.s32.totalorder %s262, %s263
      %p272 = scmp.eq.s32.totalorder %s39, 0
      %p273 = por %p271, %p272
      %p274 = scmp.ne.s32.totalorder %s262, %s263
      %p275 = scmp.eq.s32.totalorder %s40, 1
      %p276 = por %p274, %p275
      %p278 = scmp.ne.s32.totalorder %s263, %s277
      %p279 = scmp.eq.s32.totalorder %s40, 0
      %p280 = por %p278, %p279
      %s282 = sadd.s32 %s281, 1
      %p285 = scmp.eq.s32.totalorder %s34, 1
      %p286 = scmp.ne.s32.totalorder %s281, %s283
      %p287 = scmp.eq.s32.totalorder %s34, 0
      %p288 = por %p286, %p287
      %p289 = scmp.ne.s32.totalorder %s281, %s283
      %p290 = scmp.eq.s32.totalorder %s39, 1
      %p291 = por %p289, %p290
      %p292 = scmp.ne.s32.totalorder %s283, %s284
      %p293 = scmp.eq.s32.totalorder %s39, 0
      %p294 = por %p292, %p293
      %p295 = scmp.ne.s32.totalorder %s283, %s284
      %p296 = scmp.eq.s32.totalorder %s40, 1
      %p297 = por %p295, %p296
      %p299 = scmp.ne.s32.totalorder %s284, %s298
      %p300 = scmp.eq.s32.totalorder %s40, 0
      %p301 = por %p299, %p300
      %s303 = sadd.s32 %s302, 1
      %p306 = scmp.eq.s32.totalorder %s34, 1
      %p307 = scmp.ne.s32.totalorder %s302, %s304
      %p308 = scmp.eq.s32.totalorder %s34, 0
      %p309 = por %p307, %p308
      %p310 = scmp.ne.s32.totalorder %s302, %s304
      %p311 = scmp.eq.s32.totalorder %s39, 1
      %p312 = por %p310, %p311
      %p313 = scmp.ne.s32.totalorder %s304, %s305
      %p314 = scmp.eq.s32.totalorder %s39, 0
      %p315 = por %p313, %p314
      %p316 = scmp.ne.s32.totalorder %s304, %s305
      %p317 = scmp.eq.s32.totalorder %s40, 1
      %p318 = por %p316, %p317
      %p320 = scmp.ne.s32.totalorder %s305, %s319
      %p321 = scmp.eq.s32.totalorder %s40, 0
      %p322 = por %p320, %p321
      %s324 = sadd.s32 %s323, 1
      %p327 = scmp.eq.s32.totalorder %s34, 1
      %p328 = scmp.ne.s32.totalorder %s323, %s325
      %p329 = scmp.eq.s32.totalorder %s34, 0
      %p330 = por %p328, %p329
      %p331 = scmp.ne.s32.totalorder %s323, %s325
      %p332 = scmp.eq.s32.totalorder %s39, 1
      %p333 = por %p331, %p332
      %p334 = scmp.ne.s32.totalorder %s325, %s326
      %p335 = scmp.eq.s32.totalorder %s39, 0
      %p336 = por %p334, %p335
      %p337 = scmp.ne.s32.totalorder %s325, %s326
      %p338 = scmp.eq.s32.totalorder %s40, 1
      %p339 = por %p337, %p338
      %p341 = scmp.ne.s32.totalorder %s326, %s340
      %p342 = scmp.eq.s32.totalorder %s40, 0
      %p343 = por %p341, %p342
      %s345 = sadd.s32 %s344, 1
      %p348 = scmp.eq.s32.totalorder %s34, 1
      %p349 = scmp.ne.s32.totalorder %s344, %s346
      %p350 = scmp.eq.s32.totalorder %s34, 0
      %p351 = por %p349, %p350
      %p352 = scmp.ne.s32.totalorder %s344, %s346
      %p353 = scmp.eq.s32.totalorder %s39, 1
      %p354 = por %p352, %p353
      %p355 = scmp.ne.s32.totalorder %s346, %s347
      %p356 = scmp.eq.s32.totalorder %s39, 0
      %p357 = por %p355, %p356
      %p358 = scmp.ne.s32.totalorder %s346, %s347
      %p359 = scmp.eq.s32.totalorder %s40, 1
      %p360 = por %p358, %p359
      %p362 = scmp.ne.s32.totalorder %s347, %s361
      %p363 = scmp.eq.s32.totalorder %s40, 0
      %p364 = por %p362, %p363
      %s366 = sadd.s32 %s365, 1
      %p369 = scmp.eq.s32.totalorder %s34, 1
      %p370 = scmp.ne.s32.totalorder %s365, %s367
      %p371 = scmp.eq.s32.totalorder %s34, 0
      %p372 = por %p370, %p371
      %p373 = scmp.ne.s32.totalorder %s365, %s367
      %p374 = scmp.eq.s32.totalorder %s39, 1
      %p375 = por %p373, %p374
      %p376 = scmp.ne.s32.totalorder %s367, %s368
      %p377 = scmp.eq.s32.totalorder %s39, 0
      %p378 = por %p376, %p377
      %p379 = scmp.ne.s32.totalorder %s367, %s368
      %p380 = scmp.eq.s32.totalorder %s40, 1
      %p381 = por %p379, %p380
      %p383 = scmp.ne.s32.totalorder %s368, %s382
      %p384 = scmp.eq.s32.totalorder %s40, 0
      %p385 = por %p383, %p384
      %s387 = sadd.s32 %s386, 1
      %p390 = scmp.eq.s32.totalorder %s34, 1
      %p391 = scmp.ne.s32.totalorder %s386, %s388
      %p392 = scmp.eq.s32.totalorder %s34, 0
      %p393 = por %p391, %p392
      %p394 = scmp.ne.s32.totalorder %s386, %s388
      %p395 = scmp.eq.s32.totalorder %s39, 1
      %p396 = por %p394, %p395
      %p397 = scmp.ne.s32.totalorder %s388, %s389
      %p398 = scmp.eq.s32.totalorder %s39, 0
      %p399 = por %p397, %p398
      %p400 = scmp.ne.s32.totalorder %s388, %s389
      %p401 = scmp.eq.s32.totalorder %s40, 1
      %p402 = por %p400, %p401
      %p404 = scmp.ne.s32.totalorder %s389, %s403
      %p405 = scmp.eq.s32.totalorder %s40, 0
      %p406 = por %p404, %p405
      %s407 = ssub.s32 %s41, %s53
      %s408 = ssub.s32 %s42, %s49
      %s409 = sor.u32 %s407, %s408
      %p410 = scmp.eq.s32.totalorder %s409, 0
      %s412 = sadd.s32 %s411, 1
      %s413 = scalar_select %p410, %s411, %s412
      %p416 = pneg %p410
      %p417 = scmp.eq.s32.totalorder %s34, 1
      %p418 = por %p416, %p417
      %p419 = scmp.ne.s32.totalorder %s411, %s414
      %p420 = scmp.eq.s32.totalorder %s34, 0
      %p421 = por %p419, %p420
      %p422 = scmp.ne.s32.totalorder %s411, %s414
      %p423 = scmp.eq.s32.totalorder %s39, 1
      %p424 = por %p422, %p423
      %p425 = scmp.ne.s32.totalorder %s414, %s415
      %p426 = scmp.eq.s32.totalorder %s39, 0
      %p427 = por %p425, %p426
      %p428 = scmp.ne.s32.totalorder %s414, %s415
      %p429 = scmp.eq.s32.totalorder %s40, 1
      %p430 = por %p428, %p429
      %p432 = scmp.ne.s32.totalorder %s415, %s431
      %p433 = scmp.eq.s32.totalorder %s40, 0
      %p434 = por %p432, %p433
      %p435 = scmp.le.s32.totalorder 1, %s34
      %p436 = scmp.lt.s32.totalorder %s34, 3
      %p437 = pnand %p435, %p436
      %p438 = pneg %p437
      // Predicated region
      $region9: #{tpu_custom_call.1} parent=5 // pred_check
        _
      $region10: #{tpu_custom_call.1} parent=5 // pred_check_branch
        %440 = sbr.rel (%p437) target = $region12
      $region11: #{tpu_custom_call.1} parent=5 // pred_region
        %s441 = ssub.s32 %s34, 1
        // Predicated region
        $region13: #{tpu_custom_call.1} parent=11 // pred_check
          %p442 = pneg %p147
        $region14: #{tpu_custom_call.1} parent=11 // pred_check_branch
          %444 = sbr.rel (%p442) target = $region16
        $region15: #{tpu_custom_call.1} parent=11 // pred_region
          _
        $region16: #{tpu_custom_call.1} parent=11 // pred_fallthru
          _
        // Predicated region
        $region17: #{tpu_custom_call.1} parent=11 // pred_check
          %p445 = pneg %p168
        $region18: #{tpu_custom_call.1} parent=11 // pred_check_branch
          %447 = sbr.rel (%p445) target = $region20
        $region19: #{tpu_custom_call.1} parent=11 // pred_region
          _
        $region20: #{tpu_custom_call.1} parent=11 // pred_fallthru
          _
        // Predicated region
        $region21: #{tpu_custom_call.1} parent=11 // pred_check
          %p448 = pneg %p189
        $region22: #{tpu_custom_call.1} parent=11 // pred_check_branch
          %450 = sbr.rel (%p448) target = $region24
        $region23: #{tpu_custom_call.1} parent=11 // pred_region
          _
        $region24: #{tpu_custom_call.1} parent=11 // pred_fallthru
          _
        // Predicated region
        $region25: #{tpu_custom_call.1} parent=11 // pred_check
          %p451 = pneg %p210
        $region26: #{tpu_custom_call.1} parent=11 // pred_check_branch
          %453 = sbr.rel (%p451) target = $region28
        $region27: #{tpu_custom_call.1} parent=11 // pred_region
          %s455 = ssub.s32 512, 512
          %456 = vsyncadd [#allocation11], %s455
          %s457 = sshll.u32 [#allocation10], 4
          %s458 = int_to_ptr.vmem [resolvable:$true] %s457
          %463 = dma.hbm_to_vmem [thread:$0]  %s6, 512, %s458, [#allocation11], 128, 128, 8
        $region28: #{tpu_custom_call.1} parent=11 // pred_fallthru
          _
        // Predicated region
        $region29: #{tpu_custom_call.1} parent=11 // pred_check
          %p464 = pneg %p231
        $region30: #{tpu_custom_call.1} parent=11 // pred_check_branch
          %466 = sbr.rel (%p464) target = $region32
        $region31: #{tpu_custom_call.1} parent=11 // pred_region
          %s468 = ssub.s32 512, 512
          %469 = vsyncadd [#allocation11], %s468
          %s470 = sshll.u32 [#allocation12], 4
          %s471 = int_to_ptr.vmem [resolvable:$true] %s470
          %476 = dma.hbm_to_vmem [thread:$0]  %s7, 512, %s471, [#allocation11], 128, 128, 8
        $region32: #{tpu_custom_call.1} parent=11 // pred_fallthru
          _
        // Predicated region
        $region33: #{tpu_custom_call.1} parent=11 // pred_check
          %p477 = pneg %p252
        $region34: #{tpu_custom_call.1} parent=11 // pred_check_branch
          %479 = sbr.rel (%p477) target = $region36
        $region35: #{tpu_custom_call.1} parent=11 // pred_region
          %s481 = ssub.s32 512, 512
          %482 = vsyncadd [#allocation14], %s481
          %s483 = sshll.u32 [#allocation13], 4
          %s484 = int_to_ptr.vmem [resolvable:$true] %s483
          %489 = dma.hbm_to_vmem [thread:$0]  %s8, 512, %s484, [#allocation14], 128, 128, 8
        $region36: #{tpu_custom_call.1} parent=11 // pred_fallthru
          _
        // Predicated region
        $region37: #{tpu_custom_call.1} parent=11 // pred_check
          %p490 = pneg %p273
        $region38: #{tpu_custom_call.1} parent=11 // pred_check_branch
          %492 = sbr.rel (%p490) target = $region40
        $region39: #{tpu_custom_call.1} parent=11 // pred_region
          _
        $region40: #{tpu_custom_call.1} parent=11 // pred_fallthru
          _
        // Predicated region
        $region41: #{tpu_custom_call.1} parent=11 // pred_check
          %p493 = pneg %p294
        $region42: #{tpu_custom_call.1} parent=11 // pred_check_branch
          %495 = sbr.rel (%p493) target = $region44
        $region43: #{tpu_custom_call.1} parent=11 // pred_region
          _
        $region44: #{tpu_custom_call.1} parent=11 // pred_fallthru
          _
        // Predicated region
        $region45: #{tpu_custom_call.1} parent=11 // pred_check
          %p496 = pneg %p315
        $region46: #{tpu_custom_call.1} parent=11 // pred_check_branch
          %498 = sbr.rel (%p496) target = $region48
        $region47: #{tpu_custom_call.1} parent=11 // pred_region
          %s500 = ssub.s32 512, 512
          %501 = vsyncadd [#allocation14], %s500
          %s502 = sshll.u32 [#allocation15], 4
          %s503 = int_to_ptr.vmem [resolvable:$true] %s502
          %508 = dma.hbm_to_vmem [thread:$0]  %s11, 512, %s503, [#allocation14], 128, 128, 8
        $region48: #{tpu_custom_call.1} parent=11 // pred_fallthru
          _
        // Predicated region
        $region49: #{tpu_custom_call.1} parent=11 // pred_check
          %p509 = pneg %p336
        $region50: #{tpu_custom_call.1} parent=11 // pred_check_branch
          %511 = sbr.rel (%p509) target = $region52
        $region51: #{tpu_custom_call.1} parent=11 // pred_region
          %s513 = ssub.s32 512, 512
          %514 = vsyncadd [#allocation17], %s513
          %s515 = sshll.u32 [#allocation16], 4
          %s516 = int_to_ptr.vmem [resolvable:$true] %s515
          %521 = dma.hbm_to_vmem [thread:$0]  %s12, 512, %s516, [#allocation17], 128, 128, 8
        $region52: #{tpu_custom_call.1} parent=11 // pred_fallthru
          _
        // Predicated region
        $region53: #{tpu_custom_call.1} parent=11 // pred_check
          %p522 = pneg %p357
        $region54: #{tpu_custom_call.1} parent=11 // pred_check_branch
          %524 = sbr.rel (%p522) target = $region56
        $region55: #{tpu_custom_call.1} parent=11 // pred_region
          _
        $region56: #{tpu_custom_call.1} parent=11 // pred_fallthru
          _
        // Predicated region
        $region57: #{tpu_custom_call.1} parent=11 // pred_check
          %p525 = pneg %p378
        $region58: #{tpu_custom_call.1} parent=11 // pred_check_branch
          %527 = sbr.rel (%p525) target = $region60
        $region59: #{tpu_custom_call.1} parent=11 // pred_region
          _
        $region60: #{tpu_custom_call.1} parent=11 // pred_fallthru
          _
        // Predicated region
        $region61: #{tpu_custom_call.1} parent=11 // pred_check
          %p528 = pneg %p399
        $region62: #{tpu_custom_call.1} parent=11 // pred_check_branch
          %530 = sbr.rel (%p528) target = $region64
        $region63: #{tpu_custom_call.1} parent=11 // pred_region
          _
        $region64: #{tpu_custom_call.1} parent=11 // pred_fallthru
          _
      $region12: #{tpu_custom_call.1} parent=5 // pred_fallthru
        _
      %p531 = scmp.lt.s32.totalorder %s34, 2
      // Predicated region
      $region65: #{tpu_custom_call.1} parent=5 // pred_check
        %p532 = pneg %p531
      $region66: #{tpu_custom_call.1} parent=5 // pred_check_branch
        %534 = sbr.rel (%p532) target = $region68
      $region67: #{tpu_custom_call.1} parent=5 // pred_region
        // Predicated region
        $region69: #{tpu_custom_call.1} parent=67 // pred_check
          %p535 = pneg %p68
        $region70: #{tpu_custom_call.1} parent=67 // pred_check_branch
          %537 = sbr.rel (%p535) target = $region72
        $region71: #{tpu_custom_call.1} parent=67 // pred_region
          %s538 = sand.u32 %s58, 1
          %s539 = scalar_lea.sflag [#allocation5], %s538
          %s540 = sand.u32 %s58, 1
          %s541 = smul.addr %s540, 8
          %s542 = scalar_lea.vmem [#allocation4], %s541
          %s544 = ssub.s32 128, 128
          %545 = vsyncadd %s539, %s544
          %s546 = sadd.s32 %s42, %s41
          %s547 = smul.addr %s546, 128
          %s548 = scalar_lea.hbm %s0, %s547
          %s550 = sshll.u32 %s542, 4
          %s551 = int_to_ptr.vmem [resolvable:$true] %s550
          %553 = dma.hbm_to_vmem [thread:$0]  %s548, 128, %s551, %s539
        $region72: #{tpu_custom_call.1} parent=67 // pred_fallthru
          _
        // Predicated region
        $region73: #{tpu_custom_call.1} parent=67 // pred_check
          %p554 = pneg %p94
        $region74: #{tpu_custom_call.1} parent=67 // pred_check_branch
          %556 = sbr.rel (%p554) target = $region76
        $region75: #{tpu_custom_call.1} parent=67 // pred_region
          %s557 = sand.u32 %s34, 1
          %s558 = scalar_lea.sflag [#allocation8], %s557
          %s559 = sand.u32 %s84, 1
          %s560 = smul.addr %s559, 8
          %s561 = scalar_lea.vmem [#allocation7], %s560
          %s563 = ssub.s32 128, 128
          %564 = vsyncadd %s558, %s563
          %s565 = smul.addr %s41, 128
          %s566 = scalar_lea.hbm %s1, %s565
          %s568 = sshll.u32 %s561, 4
          %s569 = int_to_ptr.vmem [resolvable:$true] %s568
          %571 = dma.hbm_to_vmem [thread:$0]  %s566, 128, %s569, %s558
        $region76: #{tpu_custom_call.1} parent=67 // pred_fallthru
          _
        // Predicated region
        $region77: #{tpu_custom_call.1} parent=67 // pred_check
          %p572 = pneg %p120
        $region78: #{tpu_custom_call.1} parent=67 // pred_check_branch
          %574 = sbr.rel (%p572) target = $region80
        $region79: #{tpu_custom_call.1} parent=67 // pred_region
          %s575 = sand.u32 %s34, 1
          %s576 = scalar_lea.sflag [#allocation8], %s575
          %s577 = sand.u32 %s110, 1
          %s578 = smul.addr %s577, 8
          %s579 = scalar_lea.vmem [#allocation9], %s578
          %s581 = ssub.s32 128, 128
          %582 = vsyncadd %s576, %s581
          %s583 = smul.addr %s41, 128
          %s584 = scalar_lea.hbm %s2, %s583
          %s586 = sshll.u32 %s579, 4
          %s587 = int_to_ptr.vmem [resolvable:$true] %s586
          %589 = dma.hbm_to_vmem [thread:$0]  %s584, 128, %s587, %s576
        $region80: #{tpu_custom_call.1} parent=67 // pred_fallthru
          _
      $region68: #{tpu_custom_call.1} parent=5 // pred_fallthru
        _
      %p590 = scmp.le.s32.totalorder 1, %s34
      %p591 = scmp.lt.s32.totalorder %s34, 3
      %p592 = pnand %p590, %p591
      %p593 = pneg %p592
      // Predicated region
      $region81: #{tpu_custom_call.1} parent=5 // pred_check
        _
      $region82: #{tpu_custom_call.1} parent=5 // pred_check_branch
        %595 = sbr.rel (%p592) target = $region84
      $region83: #{tpu_custom_call.1} parent=5 // pred_region
        %s596 = ssub.s32 %s34, 1
        %s597 = sand.u32 %s61, 1
        %s598 = scalar_lea.sflag [#allocation5], %s597
        %s599 = sand.u32 %s61, 1
        %s600 = smul.addr %s599, 8
        %s601 = scalar_lea.vmem [#allocation4], %s600
        // Predicated region
        $region85: #{tpu_custom_call.1} parent=83 // pred_check
          %p602 = pneg %p74
        $region86: #{tpu_custom_call.1} parent=83 // pred_check_branch
          %604 = sbr.rel (%p602) target = $region88
        $region87: #{tpu_custom_call.1} parent=83 // pred_region
          %605 = dma.done %s598, 128
        $region88: #{tpu_custom_call.1} parent=83 // pred_fallthru
          _
        %s606 = sand.u32 %s39, 1
        %s607 = scalar_lea.sflag [#allocation8], %s606
        %s608 = sand.u32 %s87, 1
        %s609 = smul.addr %s608, 8
        %s610 = scalar_lea.vmem [#allocation7], %s609
        // Predicated region
        $region89: #{tpu_custom_call.1} parent=83 // pred_check
          %p611 = pneg %p100
        $region90: #{tpu_custom_call.1} parent=83 // pred_check_branch
          %613 = sbr.rel (%p611) target = $region92
        $region91: #{tpu_custom_call.1} parent=83 // pred_region
          %614 = dma.done %s607, 128
        $region92: #{tpu_custom_call.1} parent=83 // pred_fallthru
          _
        %s615 = sand.u32 %s39, 1
        %s616 = scalar_lea.sflag [#allocation8], %s615
        %s617 = sand.u32 %s113, 1
        %s618 = smul.addr %s617, 8
        %s619 = scalar_lea.vmem [#allocation9], %s618
        // Predicated region
        $region93: #{tpu_custom_call.1} parent=83 // pred_check
          %p620 = pneg %p126
        $region94: #{tpu_custom_call.1} parent=83 // pred_check_branch
          %622 = sbr.rel (%p620) target = $region96
        $region95: #{tpu_custom_call.1} parent=83 // pred_region
          %623 = dma.done %s616, 128
        $region96: #{tpu_custom_call.1} parent=83 // pred_fallthru
          _
        // Predicated region
        $region97: #{tpu_custom_call.1} parent=83 // pred_check
          %p624 = pneg %p210
        $region98: #{tpu_custom_call.1} parent=83 // pred_check_branch
          %626 = sbr.rel (%p624) target = $region100
        $region99: #{tpu_custom_call.1} parent=83 // pred_region
          %627 = dma.done [#allocation11], 512
        $region100: #{tpu_custom_call.1} parent=83 // pred_fallthru
          _
        // Predicated region
        $region101: #{tpu_custom_call.1} parent=83 // pred_check
          %p628 = pneg %p231
        $region102: #{tpu_custom_call.1} parent=83 // pred_check_branch
          %630 = sbr.rel (%p628) target = $region104
        $region103: #{tpu_custom_call.1} parent=83 // pred_region
          %631 = dma.done [#allocation11], 512
        $region104: #{tpu_custom_call.1} parent=83 // pred_fallthru
          _
        // Predicated region
        $region105: #{tpu_custom_call.1} parent=83 // pred_check
          %p632 = pneg %p252
        $region106: #{tpu_custom_call.1} parent=83 // pred_check_branch
          %634 = sbr.rel (%p632) target = $region108
        $region107: #{tpu_custom_call.1} parent=83 // pred_region
          %635 = dma.done [#allocation14], 512
        $region108: #{tpu_custom_call.1} parent=83 // pred_fallthru
          _
        // Predicated region
        $region109: #{tpu_custom_call.1} parent=83 // pred_check
          %p636 = pneg %p315
        $region110: #{tpu_custom_call.1} parent=83 // pred_check_branch
          %638 = sbr.rel (%p636) target = $region112
        $region111: #{tpu_custom_call.1} parent=83 // pred_region
          %639 = dma.done [#allocation14], 512
        $region112: #{tpu_custom_call.1} parent=83 // pred_fallthru
          _
        // Predicated region
        $region113: #{tpu_custom_call.1} parent=83 // pred_check
          %p640 = pneg %p336
        $region114: #{tpu_custom_call.1} parent=83 // pred_check_branch
          %642 = sbr.rel (%p640) target = $region116
        $region115: #{tpu_custom_call.1} parent=83 // pred_region
          %643 = dma.done [#allocation17], 512
        $region116: #{tpu_custom_call.1} parent=83 // pred_fallthru
          _
        %s644 = sand.u32 %s61, 1
        %s645 = scalar_lea.sflag [#allocation5], %s644
        %s646 = sand.u32 %s61, 1
        %s647 = smul.addr %s646, 8
        %s648 = scalar_lea.vmem [#allocation4], %s647
        %p649 = pneg %p74
        %p650 = pneg %p71
        %s651 = sand.u32 %s39, 1
        %s652 = scalar_lea.sflag [#allocation8], %s651
        %s653 = sand.u32 %s87, 1
        %s654 = smul.addr %s653, 8
        %s655 = scalar_lea.vmem [#allocation7], %s654
        %p656 = pneg %p100
        %p657 = pneg %p97
        %s658 = sand.u32 %s39, 1
        %s659 = scalar_lea.sflag [#allocation8], %s658
        %s660 = sand.u32 %s113, 1
        %s661 = smul.addr %s660, 8
        %s662 = scalar_lea.vmem [#allocation9], %s661
        %p663 = pneg %p126
        %p664 = pneg %p123
        %p665 = pneg %p147
        %p666 = pneg %p144
        %p667 = pneg %p168
        %p668 = pneg %p165
        %p669 = pneg %p189
        %p670 = pneg %p186
        %p671 = pneg %p210
        %p672 = pneg %p207
        %p673 = pneg %p231
        %p674 = pneg %p228
        %p675 = pneg %p252
        %p676 = pneg %p249
        %p677 = pneg %p273
        %p678 = pneg %p270
        %p679 = pneg %p294
        %p680 = pneg %p291
        %p681 = pneg %p315
        %p682 = pneg %p312
        %p683 = pneg %p336
        %p684 = pneg %p333
        %p685 = pneg %p357
        %p686 = pneg %p354
        %p687 = pneg %p378
        %p688 = pneg %p375
        %p689 = pneg %p399
        %p690 = pneg %p396
        %p691 = pneg %p427
        %p692 = pneg %p424
        %s693 = sand.u32 %s414, 1
        %s694 = scalar_lea.sflag [#allocation6], %s693
        %s695 = sand.u32 %s414, 1
        %s696 = smul.addr %s695, 8
        %s697 = scalar_lea.vmem [#allocation18], %s696
        %p698 = scmp.eq.s32.totalorder %s44, 0
        // Predicated region
        $region117: #{tpu_custom_call.1} parent=83 // pred_check
          %p699 = pneg %p698
        $region118: #{tpu_custom_call.1} parent=83 // pred_check_branch
          %701 = sbr.rel (%p699) target = $region120
        $region119: #{tpu_custom_call.1} parent=83 // pred_region
          %v702 = vld [vmem:[%s610] sm:$0xff]
          %v703 = vld [vmem:[%s619] sm:$0xff]
          %v704 = vld [vmem:[%s5] sm:$0xff]
          %v705 = vld [vmem:[%s5 + $0x8] sm:$0xff]
          %v706 = vld [vmem:[%s5 + $0x10] sm:$0xff]
          %v707 = vld [vmem:[%s5 + $0x18] sm:$0xff]
          %v708 = vld [vmem:[#allocation10] sm:$0xff]
          %v709 = vld [vmem:[#allocation10 + $0x8] sm:$0xff]
          %v710 = vld [vmem:[#allocation10 + $0x10] sm:$0xff]
          %v711 = vld [vmem:[#allocation10 + $0x18] sm:$0xff]
          %vm712 = vcmask 261120
          %v714 = vsel %vm712, %v703, 0
          %716 = vmatprep.subr.mxu0 0.0
          %717 = vmatpush1.msra.mxu0 %v708
          %718 = vmatprep.subr.mxu0 0.0
          %719 = vmatpush1.msra.mxu0 %v709
          %720 = vmatprep.subr.mxu0 0.0
          %721 = vmatpush1.msra.mxu0 %v710
          %722 = vmatprep.subr.mxu0 0.0
          %723 = vmatpush1.msra.mxu0 %v711
          %724 = vmatprep.subr.mxu0 0.0
          %725 = vmatpush1.msra.mxu0 0.0
          %726 = vmatprep.subr.mxu0 0.0
          %727 = vmatpush1.msra.mxu0 0.0
          %728 = vmatprep.subr.mxu0 0.0
          %729 = vmatpush1.msra.mxu0 0.0
          %730 = vmatprep.subr.mxu0 0.0
          %731 = vmatpush1.msra.mxu0 0.0
          %732 = vmatprep.subr.mxu0 0.0
          %733 = vmatpush1.msra.mxu0 0.0
          %734 = vmatprep.subr.mxu0 0.0
          %735 = vmatpush1.msra.mxu0 0.0
          %736 = vmatprep.subr.mxu0 0.0
          %737 = vmatpush1.msra.mxu0 0.0
          %738 = vmatprep.subr.mxu0 0.0
          %739 = vmatpush1.msra.mxu0 0.0
          %740 = vmatprep.subr.mxu0 0.0
          %741 = vmatpush1.msra.mxu0 0.0
          %742 = vmatprep.subr.mxu0 0.0
          %743 = vmatpush1.msra.mxu0 0.0
          %744 = vmatprep.subr.mxu0 0.0
          %745 = vmatpush1.msra.mxu0 0.0
          %746 = vmatprep.subr.mxu0 0.0
          %747 = vmatpush1.msra.mxu0 0.0
          %748 = vmatprep.subr.mxu0 0.0
          %749 = vmatpush1.msra.mxu0 0.0
          %750 = vmatprep.subr.mxu0 0.0
          %751 = vmatpush1.msra.mxu0 0.0
          %752 = vmatprep.subr.mxu0 0.0
          %753 = vmatpush1.msra.mxu0 0.0
          %754 = vmatprep.subr.mxu0 0.0
          %755 = vmatpush1.msra.mxu0 0.0
          %756 = vmatprep.subr.mxu0 0.0
          %757 = vmatpush1.msra.mxu0 0.0
          %758 = vmatprep.subr.mxu0 0.0
          %759 = vmatpush1.msra.mxu0 0.0
          %760 = vmatprep.subr.mxu0 0.0
          %761 = vmatpush1.msra.mxu0 0.0
          %762 = vmatprep.subr.mxu0 0.0
          %763 = vmatpush1.msra.mxu0 0.0
          %764 = vmatprep.subr.mxu0 0.0
          %765 = vmatpush1.msra.mxu0 0.0
          %766 = vmatprep.subr.mxu0 0.0
          %767 = vmatpush1.msra.mxu0 0.0
          %768 = vmatprep.subr.mxu0 0.0
          %769 = vmatpush1.msra.mxu0 0.0
          %770 = vmatprep.subr.mxu0 0.0
          %771 = vmatpush1.msra.mxu0 0.0
          %772 = vmatprep.subr.mxu0 0.0
          %773 = vmatpush1.msra.mxu0 0.0
          %774 = vmatprep.subr.mxu0 0.0
          %775 = vmatpush1.msra.mxu0 0.0
          %776 = vmatprep.subr.mxu0 0.0
          %777 = vmatpush1.msra.mxu0 0.0
          %778 = vmatprep.subr.mxu0 0.0
          %779 = vmatpush1.msra.mxu0 0.0
          %780 = vmatprep.mubr.f32.mxu0 0.0
          %781 = vmatmul.mubr.f32.gmra.mrb[0].mxu0 %v714
          %v782 = vpop.f32.mrb[0].mxu0
          %v783 = vadd.f32 0.0, %v782
          %v784 = vpop.f32.mrb[0].mxu0
          %785 = vdwg.mxu0
          %v786 = vld [vmem:[#allocation12] sm:$0xff]
          %v787 = vld [vmem:[#allocation12 + $0x8] sm:$0xff]
          %v788 = vld [vmem:[#allocation12 + $0x10] sm:$0xff]
          %v789 = vld [vmem:[#allocation12 + $0x18] sm:$0xff]
          %v791 = vsel %vm712, %v702, 0
          %793 = vmatprep.subr.mxu0 0.0
          %794 = vmatpush1.msra.mxu0 %v786
          %795 = vmatprep.subr.mxu0 0.0
          %796 = vmatpush1.msra.mxu0 %v787
          %797 = vmatprep.subr.mxu0 0.0
          %798 = vmatpush1.msra.mxu0 %v788
          %799 = vmatprep.subr.mxu0 0.0
          %800 = vmatpush1.msra.mxu0 %v789
          %801 = vmatprep.subr.mxu0 0.0
          %802 = vmatpush1.msra.mxu0 0.0
          %803 = vmatprep.subr.mxu0 0.0
          %804 = vmatpush1.msra.mxu0 0.0
          %805 = vmatprep.subr.mxu0 0.0
          %806 = vmatpush1.msra.mxu0 0.0
          %807 = vmatprep.subr.mxu0 0.0
          %808 = vmatpush1.msra.mxu0 0.0
          %809 = vmatprep.subr.mxu0 0.0
          %810 = vmatpush1.msra.mxu0 0.0
          %811 = vmatprep.subr.mxu0 0.0
          %812 = vmatpush1.msra.mxu0 0.0
          %813 = vmatprep.subr.mxu0 0.0
          %814 = vmatpush1.msra.mxu0 0.0
          %815 = vmatprep.subr.mxu0 0.0
          %816 = vmatpush1.msra.mxu0 0.0
          %817 = vmatprep.subr.mxu0 0.0
          %818 = vmatpush1.msra.mxu0 0.0
          %819 = vmatprep.subr.mxu0 0.0
          %820 = vmatpush1.msra.mxu0 0.0
          %821 = vmatprep.subr.mxu0 0.0
          %822 = vmatpush1.msra.mxu0 0.0
          %823 = vmatprep.subr.mxu0 0.0
          %824 = vmatpush1.msra.mxu0 0.0
          %825 = vmatprep.subr.mxu0 0.0
          %826 = vmatpush1.msra.mxu0 0.0
          %827 = vmatprep.subr.mxu0 0.0
          %828 = vmatpush1.msra.mxu0 0.0
          %829 = vmatprep.subr.mxu0 0.0
          %830 = vmatpush1.msra.mxu0 0.0
          %831 = vmatprep.subr.mxu0 0.0
          %832 = vmatpush1.msra.mxu0 0.0
          %833 = vmatprep.subr.mxu0 0.0
          %834 = vmatpush1.msra.mxu0 0.0
          %835 = vmatprep.subr.mxu0 0.0
          %836 = vmatpush1.msra.mxu0 0.0
          %837 = vmatprep.subr.mxu0 0.0
          %838 = vmatpush1.msra.mxu0 0.0
          %839 = vmatprep.subr.mxu0 0.0
          %840 = vmatpush1.msra.mxu0 0.0
          %841 = vmatprep.subr.mxu0 0.0
          %842 = vmatpush1.msra.mxu0 0.0
          %843 = vmatprep.subr.mxu0 0.0
          %844 = vmatpush1.msra.mxu0 0.0
          %845 = vmatprep.subr.mxu0 0.0
          %846 = vmatpush1.msra.mxu0 0.0
          %847 = vmatprep.subr.mxu0 0.0
          %848 = vmatpush1.msra.mxu0 0.0
          %849 = vmatprep.subr.mxu0 0.0
          %850 = vmatpush1.msra.mxu0 0.0
          %851 = vmatprep.subr.mxu0 0.0
          %852 = vmatpush1.msra.mxu0 0.0
          %853 = vmatprep.subr.mxu0 0.0
          %854 = vmatpush1.msra.mxu0 0.0
          %855 = vmatprep.subr.mxu0 0.0
          %856 = vmatpush1.msra.mxu0 0.0
          %857 = vmatprep.mubr.f32.mxu0 0.0
          %858 = vmatmul.mubr.f32.gmra.mrb[0].mxu0 %v791
          %v859 = vpop.f32.mrb[0].mxu0
          %v860 = vadd.f32 0.0, %v859
          %v861 = vpop.f32.mrb[0].mxu0
          %862 = vdwg.mxu0
          %863 = vmatprep.subr.mxu0 0.0
          %864 = vmatpush1.msra.mxu0 %v704
          %865 = vmatprep.subr.mxu0 0.0
          %866 = vmatpush1.msra.mxu0 %v705
          %867 = vmatprep.subr.mxu0 0.0
          %868 = vmatpush1.msra.mxu0 %v706
          %869 = vmatprep.subr.mxu0 0.0
          %870 = vmatpush1.msra.mxu0 %v707
          %871 = vmatprep.subr.mxu0 0.0
          %872 = vmatpush1.msra.mxu0 0.0
          %873 = vmatprep.subr.mxu0 0.0
          %874 = vmatpush1.msra.mxu0 0.0
          %875 = vmatprep.subr.mxu0 0.0
          %876 = vmatpush1.msra.mxu0 0.0
          %877 = vmatprep.subr.mxu0 0.0
          %878 = vmatpush1.msra.mxu0 0.0
          %879 = vmatprep.subr.mxu0 0.0
          %880 = vmatpush1.msra.mxu0 0.0
          %881 = vmatprep.subr.mxu0 0.0
          %882 = vmatpush1.msra.mxu0 0.0
          %883 = vmatprep.subr.mxu0 0.0
          %884 = vmatpush1.msra.mxu0 0.0
          %885 = vmatprep.subr.mxu0 0.0
          %886 = vmatpush1.msra.mxu0 0.0
          %887 = vmatprep.subr.mxu0 0.0
          %888 = vmatpush1.msra.mxu0 0.0
          %889 = vmatprep.subr.mxu0 0.0
          %890 = vmatpush1.msra.mxu0 0.0
          %891 = vmatprep.subr.mxu0 0.0
          %892 = vmatpush1.msra.mxu0 0.0
          %893 = vmatprep.subr.mxu0 0.0
          %894 = vmatpush1.msra.mxu0 0.0
          %895 = vmatprep.subr.mxu0 0.0
          %896 = vmatpush1.msra.mxu0 0.0
          %897 = vmatprep.subr.mxu0 0.0
          %898 = vmatpush1.msra.mxu0 0.0
          %899 = vmatprep.subr.mxu0 0.0
          %900 = vmatpush1.msra.mxu0 0.0
          %901 = vmatprep.subr.mxu0 0.0
          %902 = vmatpush1.msra.mxu0 0.0
          %903 = vmatprep.subr.mxu0 0.0
          %904 = vmatpush1.msra.mxu0 0.0
          %905 = vmatprep.subr.mxu0 0.0
          %906 = vmatpush1.msra.mxu0 0.0
          %907 = vmatprep.subr.mxu0 0.0
          %908 = vmatpush1.msra.mxu0 0.0
          %909 = vmatprep.subr.mxu0 0.0
          %910 = vmatpush1.msra.mxu0 0.0
          %911 = vmatprep.subr.mxu0 0.0
          %912 = vmatpush1.msra.mxu0 0.0
          %913 = vmatprep.subr.mxu0 0.0
          %914 = vmatpush1.msra.mxu0 0.0
          %915 = vmatprep.subr.mxu0 0.0
          %916 = vmatpush1.msra.mxu0 0.0
          %917 = vmatprep.subr.mxu0 0.0
          %918 = vmatpush1.msra.mxu0 0.0
          %919 = vmatprep.subr.mxu0 0.0
          %920 = vmatpush1.msra.mxu0 0.0
          %921 = vmatprep.subr.mxu0 0.0
          %922 = vmatpush1.msra.mxu0 0.0
          %923 = vmatprep.subr.mxu0 0.0
          %924 = vmatpush1.msra.mxu0 0.0
          %925 = vmatprep.subr.mxu0 0.0
          %926 = vmatpush1.msra.mxu0 0.0
          %927 = vmatprep.mubr.f32.mxu0 0.0
          %928 = vmatmul.mubr.f32.gmra.mrb[0].mxu0 %v791
          %v929 = vpop.f32.mrb[0].mxu0
          %v930 = vadd.f32 %v783, %v929
          %v931 = vpop.f32.mrb[0].mxu0
          %932 = vdwg.mxu0
          %vm933 = vcmp.gt.f32.partialorder %v930, 0.0
          %v934 = vadd.f32 %v930, 1.0
          %v935 = vmul.f32 %v930, 1.442695
          %v936 = vpow.pop %v935
          %v937 = vsel %vm933, %v934, %v936
          %v938 = vmul.f32 %v860, 0.125
          %939 = vxpose.xlu0.b32.start [1/16] %v937, 128
          %940 = vxpose.xlu0.b32.cont [2/16] 0.0, 128
          %941 = vxpose.xlu0.b32.cont [3/16] 0.0, 128
          %942 = vxpose.xlu0.b32.cont [4/16] 0.0, 128
          %943 = vxpose.xlu0.b32.cont [5/16] 0.0, 128
          %944 = vxpose.xlu0.b32.cont [6/16] 0.0, 128
          %945 = vxpose.xlu0.b32.cont [7/16] 0.0, 128
          %946 = vxpose.xlu0.b32.cont [8/16] 0.0, 128
          %947 = vxpose.xlu0.b32.cont [9/16] 0.0, 128
          %948 = vxpose.xlu0.b32.cont [10/16] 0.0, 128
          %949 = vxpose.xlu0.b32.cont [11/16] 0.0, 128
          %950 = vxpose.xlu0.b32.cont [12/16] 0.0, 128
          %951 = vxpose.xlu0.b32.cont [13/16] 0.0, 128
          %952 = vxpose.xlu0.b32.cont [14/16] 0.0, 128
          %953 = vxpose.xlu0.b32.cont [15/16] 0.0, 128
          %954 = vxpose.xlu0.b32.end [16/16] 0.0, 128
          %v955 = vpop.trf.xlu0
          %v956 = vpop.trf.xlu0
          %v957 = vpop.trf.xlu0
          %v958 = vpop.trf.xlu0
          %v959 = vpop.trf.xlu0
          %v960 = vpop.trf.xlu0
          %v961 = vpop.trf.xlu0
          %v962 = vpop.trf.xlu0
          %v963 = vpop.trf.xlu0
          %v964 = vpop.trf.xlu0
          %v965 = vpop.trf.xlu0
          %v966 = vpop.trf.xlu0
          %v967 = vpop.trf.xlu0
          %v968 = vpop.trf.xlu0
          %v969 = vpop.trf.xlu0
          %v970 = vpop.trf.xlu0
          %vm971 = vcmask 64512
          %v973 = vsel %vm971, %v955, 0
          %v976 = vsel %vm971, %v956, 0
          %v979 = vsel %vm971, %v957, 0
          %v982 = vsel %vm971, %v958, 0
          %984 = vmatprep.subr.mxu0 0.0
          %985 = vmatpush1.msra.mxu0 %v938
          %986 = vmatprep.subr.mxu0 0.0
          %987 = vmatpush1.msra.mxu0 0.0
          %988 = vmatprep.subr.mxu0 0.0
          %989 = vmatpush1.msra.mxu0 0.0
          %990 = vmatprep.subr.mxu0 0.0
          %991 = vmatpush1.msra.mxu0 0.0
          %992 = vmatprep.subr.mxu0 0.0
          %993 = vmatpush1.msra.mxu0 0.0
          %994 = vmatprep.subr.mxu0 0.0
          %995 = vmatpush1.msra.mxu0 0.0
          %996 = vmatprep.subr.mxu0 0.0
          %997 = vmatpush1.msra.mxu0 0.0
          %998 = vmatprep.subr.mxu0 0.0
          %999 = vmatpush1.msra.mxu0 0.0
          %1000 = vmatprep.subr.mxu0 0.0
          %1001 = vmatpush1.msra.mxu0 0.0
          %1002 = vmatprep.subr.mxu0 0.0
          %1003 = vmatpush1.msra.mxu0 0.0
          %1004 = vmatprep.subr.mxu0 0.0
          %1005 = vmatpush1.msra.mxu0 0.0
          %1006 = vmatprep.subr.mxu0 0.0
          %1007 = vmatpush1.msra.mxu0 0.0
          %1008 = vmatprep.subr.mxu0 0.0
          %1009 = vmatpush1.msra.mxu0 0.0
          %1010 = vmatprep.subr.mxu0 0.0
          %1011 = vmatpush1.msra.mxu0 0.0
          %1012 = vmatprep.subr.mxu0 0.0
          %1013 = vmatpush1.msra.mxu0 0.0
          %1014 = vmatprep.subr.mxu0 0.0
          %1015 = vmatpush1.msra.mxu0 0.0
          %1016 = vmatprep.subr.mxu0 0.0
          %1017 = vmatpush1.msra.mxu0 0.0
          %1018 = vmatprep.subr.mxu0 0.0
          %1019 = vmatpush1.msra.mxu0 0.0
          %1020 = vmatprep.subr.mxu0 0.0
          %1021 = vmatpush1.msra.mxu0 0.0
          %1022 = vmatprep.subr.mxu0 0.0
          %1023 = vmatpush1.msra.mxu0 0.0
          %1024 = vmatprep.subr.mxu0 0.0
          %1025 = vmatpush1.msra.mxu0 0.0
          %1026 = vmatprep.subr.mxu0 0.0
          %1027 = vmatpush1.msra.mxu0 0.0
          %1028 = vmatprep.subr.mxu0 0.0
          %1029 = vmatpush1.msra.mxu0 0.0
          %1030 = vmatprep.subr.mxu0 0.0
          %1031 = vmatpush1.msra.mxu0 0.0
          %1032 = vmatprep.subr.mxu0 0.0
          %1033 = vmatpush1.msra.mxu0 0.0
          %1034 = vmatprep.subr.mxu0 0.0
          %1035 = vmatpush1.msra.mxu0 0.0
          %1036 = vmatprep.subr.mxu0 0.0
          %1037 = vmatpush1.msra.mxu0 0.0
          %1038 = vmatprep.subr.mxu0 0.0
          %1039 = vmatpush1.msra.mxu0 0.0
          %1040 = vmatprep.subr.mxu0 0.0
          %1041 = vmatpush1.msra.mxu0 0.0
          %1042 = vmatprep.subr.mxu0 0.0
          %1043 = vmatpush1.msra.mxu0 0.0
          %1044 = vmatprep.subr.mxu0 0.0
          %1045 = vmatpush1.msra.mxu0 0.0
          %1046 = vmatprep.subr.mxu0 0.0
          %1047 = vmatpush1.msra.mxu0 0.0
          %1048 = vmatprep.mubr.f32.mxu0 0.0
          %1049 = vmatmul.mubr.f32.gmra.mrb[0].mxu0 %v973
          %v1050 = vpop.f32.mrb[0].mxu0
          %v1051 = vadd.f32 0.0, %v1050
          %v1052 = vpop.f32.mrb[0].mxu0
          %1053 = vmatprep.mubr.f32.mxu0 0.0
          %1054 = vmatmul.mubr.f32.gmra.mrb[0].mxu0 %v976
          %v1055 = vpop.f32.mrb[0].mxu0
          %v1056 = vadd.f32 0.0, %v1055
          %v1057 = vpop.f32.mrb[0].mxu0
          %1058 = vmatprep.mubr.f32.mxu0 0.0
          %1059 = vmatmul.mubr.f32.gmra.mrb[0].mxu0 %v979
          %v1060 = vpop.f32.mrb[0].mxu0
          %v1061 = vadd.f32 0.0, %v1060
          %v1062 = vpop.f32.mrb[0].mxu0
          %1063 = vmatprep.mubr.f32.mxu0 0.0
          %1064 = vmatmul.mubr.f32.gmra.mrb[0].mxu0 %v982
          %v1065 = vpop.f32.mrb[0].mxu0
          %v1066 = vadd.f32 0.0, %v1065
          %v1067 = vpop.f32.mrb[0].mxu0
          %1068 = vdwg.mxu0
          %v1069 = vld [vmem:[%s3] sm:$0xff]
          %v1070 = vld [vmem:[%s3 + $0x8] sm:$0xff]
          %v1071 = vld [vmem:[%s3 + $0x10] sm:$0xff]
          %v1072 = vld [vmem:[%s3 + $0x18] sm:$0xff]
          %v1073 = vmul.f32 %v1051, %v1069
          %v1074 = vmul.f32 %v1056, %v1070
          %v1075 = vmul.f32 %v1061, %v1071
          %v1076 = vmul.f32 %v1066, %v1072
          %1077 = vst.msk [vmem:[#allocation2] sm:$0xff] %vm712, %v1073
          %1078 = vst.msk [vmem:[#allocation2 + $0x8] sm:$0xff] %vm712, %v1074
          %1079 = vst.msk [vmem:[#allocation2 + $0x10] sm:$0xff] %vm712, %v1075
          %1080 = vst.msk [vmem:[#allocation2 + $0x18] sm:$0xff] %vm712, %v1076
          %v1081 = vsel %vm712, %v937, 0.0
          %v1082 = vrot.slane %v1081, 4
          %v1083 = vadd.f32 %v1081, %v1082
          %v1084 = vrot.slane %v1083, 2
          %v1085 = vadd.f32 %v1083, %v1084
          %v1086 = vrot.slane %v1085, 1
          %v1087 = vadd.f32 %v1085, %v1086
          %vm1088 = vcmask 253952
          %1089 = vst.msk [vmem:[#allocation3] sm:$0x1] %vm1088, %v1087
        $region120: #{tpu_custom_call.1} parent=83 // pred_fallthru
          _
        %v1090 = vld [vmem:[%s601] sm:$0xff]
        %v1091 = vld [vmem:[%s4] sm:$0xff]
        %v1092 = vld [vmem:[%s4 + $0x8] sm:$0xff]
        %v1093 = vld [vmem:[%s4 + $0x10] sm:$0xff]
        %v1094 = vld [vmem:[%s4 + $0x18] sm:$0xff]
        %vm1095 = vcmask 261120
        %v1097 = vsel %vm1095, %v1090, 0
        %1099 = vmatprep.subr.mxu0 0.0
        %1100 = vmatpush1.msra.mxu0 %v1091
        %1101 = vmatprep.subr.mxu0 0.0
        %1102 = vmatpush1.msra.mxu0 %v1092
        %1103 = vmatprep.subr.mxu0 0.0
        %1104 = vmatpush1.msra.mxu0 %v1093
        %1105 = vmatprep.subr.mxu0 0.0
        %1106 = vmatpush1.msra.mxu0 %v1094
        %1107 = vmatprep.subr.mxu0 0.0
        %1108 = vmatpush1.msra.mxu0 0.0
        %1109 = vmatprep.subr.mxu0 0.0
        %1110 = vmatpush1.msra.mxu0 0.0
        %1111 = vmatprep.subr.mxu0 0.0
        %1112 = vmatpush1.msra.mxu0 0.0
        %1113 = vmatprep.subr.mxu0 0.0
        %1114 = vmatpush1.msra.mxu0 0.0
        %1115 = vmatprep.subr.mxu0 0.0
        %1116 = vmatpush1.msra.mxu0 0.0
        %1117 = vmatprep.subr.mxu0 0.0
        %1118 = vmatpush1.msra.mxu0 0.0
        %1119 = vmatprep.subr.mxu0 0.0
        %1120 = vmatpush1.msra.mxu0 0.0
        %1121 = vmatprep.subr.mxu0 0.0
        %1122 = vmatpush1.msra.mxu0 0.0
        %1123 = vmatprep.subr.mxu0 0.0
        %1124 = vmatpush1.msra.mxu0 0.0
        %1125 = vmatprep.subr.mxu0 0.0
        %1126 = vmatpush1.msra.mxu0 0.0
        %1127 = vmatprep.subr.mxu0 0.0
        %1128 = vmatpush1.msra.mxu0 0.0
        %1129 = vmatprep.subr.mxu0 0.0
        %1130 = vmatpush1.msra.mxu0 0.0
        %1131 = vmatprep.subr.mxu0 0.0
        %1132 = vmatpush1.msra.mxu0 0.0
        %1133 = vmatprep.subr.mxu0 0.0
        %1134 = vmatpush1.msra.mxu0 0.0
        %1135 = vmatprep.subr.mxu0 0.0
        %1136 = vmatpush1.msra.mxu0 0.0
        %1137 = vmatprep.subr.mxu0 0.0
        %1138 = vmatpush1.msra.mxu0 0.0
        %1139 = vmatprep.subr.mxu0 0.0
        %1140 = vmatpush1.msra.mxu0 0.0
        %1141 = vmatprep.subr.mxu0 0.0
        %1142 = vmatpush1.msra.mxu0 0.0
        %1143 = vmatprep.subr.mxu0 0.0
        %1144 = vmatpush1.msra.mxu0 0.0
        %1145 = vmatprep.subr.mxu0 0.0
        %1146 = vmatpush1.msra.mxu0 0.0
        %1147 = vmatprep.subr.mxu0 0.0
        %1148 = vmatpush1.msra.mxu0 0.0
        %1149 = vmatprep.subr.mxu0 0.0
        %1150 = vmatpush1.msra.mxu0 0.0
        %1151 = vmatprep.subr.mxu0 0.0
        %1152 = vmatpush1.msra.mxu0 0.0
        %1153 = vmatprep.subr.mxu0 0.0
        %1154 = vmatpush1.msra.mxu0 0.0
        %1155 = vmatprep.subr.mxu0 0.0
        %1156 = vmatpush1.msra.mxu0 0.0
        %1157 = vmatprep.subr.mxu0 0.0
        %1158 = vmatpush1.msra.mxu0 0.0
        %1159 = vmatprep.subr.mxu0 0.0
        %1160 = vmatpush1.msra.mxu0 0.0
        %1161 = vmatprep.subr.mxu0 0.0
        %1162 = vmatpush1.msra.mxu0 0.0
        %1163 = vmatprep.mubr.f32.mxu0 0.0
        %1164 = vmatmul.mubr.f32.gmra.mrb[0].mxu0 %v1097
        %v1165 = vpop.f32.mrb[0].mxu0
        %v1166 = vadd.f32 0.0, %v1165
        %v1167 = vpop.f32.mrb[0].mxu0
        %1168 = vdwg.mxu0
        %vm1169 = vcmp.gt.f32.partialorder %v1166, 0.0
        %v1170 = vadd.f32 %v1166, 1.0
        %v1171 = vmul.f32 %v1166, 1.442695
        %v1172 = vpow.pop %v1171
        %v1173 = vsel %vm1169, %v1170, %v1172
        %v1174 = vld [vmem:[#allocation2] sm:$0xff]
        %v1175 = vld [vmem:[#allocation2 + $0x8] sm:$0xff]
        %v1176 = vld [vmem:[#allocation2 + $0x10] sm:$0xff]
        %v1177 = vld [vmem:[#allocation2 + $0x18] sm:$0xff]
        %v1179 = vsel %vm1095, %v1173, 0
        %1181 = vmatprep.subr.mxu0 0.0
        %1182 = vmatpush1.msra.mxu0 %v1174
        %1183 = vmatprep.subr.mxu0 0.0
        %1184 = vmatpush1.msra.mxu0 %v1175
        %1185 = vmatprep.subr.mxu0 0.0
        %1186 = vmatpush1.msra.mxu0 %v1176
        %1187 = vmatprep.subr.mxu0 0.0
        %1188 = vmatpush1.msra.mxu0 %v1177
        %1189 = vmatprep.subr.mxu0 0.0
        %1190 = vmatpush1.msra.mxu0 0.0
        %1191 = vmatprep.subr.mxu0 0.0
        %1192 = vmatpush1.msra.mxu0 0.0
        %1193 = vmatprep.subr.mxu0 0.0
        %1194 = vmatpush1.msra.mxu0 0.0
        %1195 = vmatprep.subr.mxu0 0.0
        %1196 = vmatpush1.msra.mxu0 0.0
        %1197 = vmatprep.subr.mxu0 0.0
        %1198 = vmatpush1.msra.mxu0 0.0
        %1199 = vmatprep.subr.mxu0 0.0
        %1200 = vmatpush1.msra.mxu0 0.0
        %1201 = vmatprep.subr.mxu0 0.0
        %1202 = vmatpush1.msra.mxu0 0.0
        %1203 = vmatprep.subr.mxu0 0.0
        %1204 = vmatpush1.msra.mxu0 0.0
        %1205 = vmatprep.subr.mxu0 0.0
        %1206 = vmatpush1.msra.mxu0 0.0
        %1207 = vmatprep.subr.mxu0 0.0
        %1208 = vmatpush1.msra.mxu0 0.0
        %1209 = vmatprep.subr.mxu0 0.0
        %1210 = vmatpush1.msra.mxu0 0.0
        %1211 = vmatprep.subr.mxu0 0.0
        %1212 = vmatpush1.msra.mxu0 0.0
        %1213 = vmatprep.subr.mxu0 0.0
        %1214 = vmatpush1.msra.mxu0 0.0
        %1215 = vmatprep.subr.mxu0 0.0
        %1216 = vmatpush1.msra.mxu0 0.0
        %1217 = vmatprep.subr.mxu0 0.0
        %1218 = vmatpush1.msra.mxu0 0.0
        %1219 = vmatprep.subr.mxu0 0.0
        %1220 = vmatpush1.msra.mxu0 0.0
        %1221 = vmatprep.subr.mxu0 0.0
        %1222 = vmatpush1.msra.mxu0 0.0
        %1223 = vmatprep.subr.mxu0 0.0
        %1224 = vmatpush1.msra.mxu0 0.0
        %1225 = vmatprep.subr.mxu0 0.0
        %1226 = vmatpush1.msra.mxu0 0.0
        %1227 = vmatprep.subr.mxu0 0.0
        %1228 = vmatpush1.msra.mxu0 0.0
        %1229 = vmatprep.subr.mxu0 0.0
        %1230 = vmatpush1.msra.mxu0 0.0
        %1231 = vmatprep.subr.mxu0 0.0
        %1232 = vmatpush1.msra.mxu0 0.0
        %1233 = vmatprep.subr.mxu0 0.0
        %1234 = vmatpush1.msra.mxu0 0.0
        %1235 = vmatprep.subr.mxu0 0.0
        %1236 = vmatpush1.msra.mxu0 0.0
        %1237 = vmatprep.subr.mxu0 0.0
        %1238 = vmatpush1.msra.mxu0 0.0
        %1239 = vmatprep.subr.mxu0 0.0
        %1240 = vmatpush1.msra.mxu0 0.0
        %1241 = vmatprep.subr.mxu0 0.0
        %1242 = vmatpush1.msra.mxu0 0.0
        %1243 = vmatprep.subr.mxu0 0.0
        %1244 = vmatpush1.msra.mxu0 0.0
        %1245 = vmatprep.mubr.f32.mxu0 0.0
        %1246 = vmatmul.mubr.f32.gmra.mrb[0].mxu0 %v1179
        %v1247 = vpop.f32.mrb[0].mxu0
        %v1248 = vadd.f32 0.0, %v1247
        %v1249 = vpop.f32.mrb[0].mxu0
        %1250 = vdwg.mxu0
        %v1251 = vld [vmem:[#allocation3] sm:$0x1]
        %v1253 = vlaneseq
        %v1254 = vshrl.u32 %v1253, 7
        %v1255 = vsub.s32 0, %v1254
        %v1256 = vrot.slane %v1251, %v1255
        %v1258 = vmul.f32 %v1173, %v1256
        %v1259 = vld [vmem:[%s3] sm:$0xff]
        %v1260 = vld [vmem:[%s3 + $0x8] sm:$0xff]
        %v1261 = vld [vmem:[%s3 + $0x10] sm:$0xff]
        %v1262 = vld [vmem:[%s3 + $0x18] sm:$0xff]
        %v1264 = vsel %vm1095, %v1258, 0
        %1266 = vmatprep.subr.mxu0 0.0
        %1267 = vmatpush1.msra.mxu0 %v1259
        %1268 = vmatprep.subr.mxu0 0.0
        %1269 = vmatpush1.msra.mxu0 %v1260
        %1270 = vmatprep.subr.mxu0 0.0
        %1271 = vmatpush1.msra.mxu0 %v1261
        %1272 = vmatprep.subr.mxu0 0.0
        %1273 = vmatpush1.msra.mxu0 %v1262
        %1274 = vmatprep.subr.mxu0 0.0
        %1275 = vmatpush1.msra.mxu0 0.0
        %1276 = vmatprep.subr.mxu0 0.0
        %1277 = vmatpush1.msra.mxu0 0.0
        %1278 = vmatprep.subr.mxu0 0.0
        %1279 = vmatpush1.msra.mxu0 0.0
        %1280 = vmatprep.subr.mxu0 0.0
        %1281 = vmatpush1.msra.mxu0 0.0
        %1282 = vmatprep.subr.mxu0 0.0
        %1283 = vmatpush1.msra.mxu0 0.0
        %1284 = vmatprep.subr.mxu0 0.0
        %1285 = vmatpush1.msra.mxu0 0.0
        %1286 = vmatprep.subr.mxu0 0.0
        %1287 = vmatpush1.msra.mxu0 0.0
        %1288 = vmatprep.subr.mxu0 0.0
        %1289 = vmatpush1.msra.mxu0 0.0
        %1290 = vmatprep.subr.mxu0 0.0
        %1291 = vmatpush1.msra.mxu0 0.0
        %1292 = vmatprep.subr.mxu0 0.0
        %1293 = vmatpush1.msra.mxu0 0.0
        %1294 = vmatprep.subr.mxu0 0.0
        %1295 = vmatpush1.msra.mxu0 0.0
        %1296 = vmatprep.subr.mxu0 0.0
        %1297 = vmatpush1.msra.mxu0 0.0
        %1298 = vmatprep.subr.mxu0 0.0
        %1299 = vmatpush1.msra.mxu0 0.0
        %1300 = vmatprep.subr.mxu0 0.0
        %1301 = vmatpush1.msra.mxu0 0.0
        %1302 = vmatprep.subr.mxu0 0.0
        %1303 = vmatpush1.msra.mxu0 0.0
        %1304 = vmatprep.subr.mxu0 0.0
        %1305 = vmatpush1.msra.mxu0 0.0
        %1306 = vmatprep.subr.mxu0 0.0
        %1307 = vmatpush1.msra.mxu0 0.0
        %1308 = vmatprep.subr.mxu0 0.0
        %1309 = vmatpush1.msra.mxu0 0.0
        %1310 = vmatprep.subr.mxu0 0.0
        %1311 = vmatpush1.msra.mxu0 0.0
        %1312 = vmatprep.subr.mxu0 0.0
        %1313 = vmatpush1.msra.mxu0 0.0
        %1314 = vmatprep.subr.mxu0 0.0
        %1315 = vmatpush1.msra.mxu0 0.0
        %1316 = vmatprep.subr.mxu0 0.0
        %1317 = vmatpush1.msra.mxu0 0.0
        %1318 = vmatprep.subr.mxu0 0.0
        %1319 = vmatpush1.msra.mxu0 0.0
        %1320 = vmatprep.subr.mxu0 0.0
        %1321 = vmatpush1.msra.mxu0 0.0
        %1322 = vmatprep.subr.mxu0 0.0
        %1323 = vmatpush1.msra.mxu0 0.0
        %1324 = vmatprep.subr.mxu0 0.0
        %1325 = vmatpush1.msra.mxu0 0.0
        %1326 = vmatprep.subr.mxu0 0.0
        %1327 = vmatpush1.msra.mxu0 0.0
        %1328 = vmatprep.subr.mxu0 0.0
        %1329 = vmatpush1.msra.mxu0 0.0
        %1330 = vmatprep.mubr.f32.mxu0 0.0
        %1331 = vmatmul.mubr.f32.gmra.mrb[0].mxu0 %v1264
        %v1332 = vpop.f32.mrb[0].mxu0
        %v1333 = vadd.f32 1e-06, %v1332
        %v1334 = vpop.f32.mrb[0].mxu0
        %1335 = vdwg.mxu0
        %v1336 = vrcp.pop %v1333
        %v1337 = vmul.f32 %v1248, %v1336
        %v1338 = vmul.f32 %v1337, 8.0
        %v1339 = vld [vmem:[#allocation13] sm:$0xff]
        %v1340 = vld [vmem:[#allocation13 + $0x8] sm:$0xff]
        %v1341 = vld [vmem:[#allocation13 + $0x10] sm:$0xff]
        %v1342 = vld [vmem:[#allocation13 + $0x18] sm:$0xff]
        %v1344 = vsel %vm1095, %v1338, 0
        %1346 = vmatprep.subr.mxu0 0.0
        %1347 = vmatpush1.msra.mxu0 %v1339
        %1348 = vmatprep.subr.mxu0 0.0
        %1349 = vmatpush1.msra.mxu0 %v1340
        %1350 = vmatprep.subr.mxu0 0.0
        %1351 = vmatpush1.msra.mxu0 %v1341
        %1352 = vmatprep.subr.mxu0 0.0
        %1353 = vmatpush1.msra.mxu0 %v1342
        %1354 = vmatprep.subr.mxu0 0.0
        %1355 = vmatpush1.msra.mxu0 0.0
        %1356 = vmatprep.subr.mxu0 0.0
        %1357 = vmatpush1.msra.mxu0 0.0
        %1358 = vmatprep.subr.mxu0 0.0
        %1359 = vmatpush1.msra.mxu0 0.0
        %1360 = vmatprep.subr.mxu0 0.0
        %1361 = vmatpush1.msra.mxu0 0.0
        %1362 = vmatprep.subr.mxu0 0.0
        %1363 = vmatpush1.msra.mxu0 0.0
        %1364 = vmatprep.subr.mxu0 0.0
        %1365 = vmatpush1.msra.mxu0 0.0
        %1366 = vmatprep.subr.mxu0 0.0
        %1367 = vmatpush1.msra.mxu0 0.0
        %1368 = vmatprep.subr.mxu0 0.0
        %1369 = vmatpush1.msra.mxu0 0.0
        %1370 = vmatprep.subr.mxu0 0.0
        %1371 = vmatpush1.msra.mxu0 0.0
        %1372 = vmatprep.subr.mxu0 0.0
        %1373 = vmatpush1.msra.mxu0 0.0
        %1374 = vmatprep.subr.mxu0 0.0
        %1375 = vmatpush1.msra.mxu0 0.0
        %1376 = vmatprep.subr.mxu0 0.0
        %1377 = vmatpush1.msra.mxu0 0.0
        %1378 = vmatprep.subr.mxu0 0.0
        %1379 = vmatpush1.msra.mxu0 0.0
        %1380 = vmatprep.subr.mxu0 0.0
        %1381 = vmatpush1.msra.mxu0 0.0
        %1382 = vmatprep.subr.mxu0 0.0
        %1383 = vmatpush1.msra.mxu0 0.0
        %1384 = vmatprep.subr.mxu0 0.0
        %1385 = vmatpush1.msra.mxu0 0.0
        %1386 = vmatprep.subr.mxu0 0.0
        %1387 = vmatpush1.msra.mxu0 0.0
        %1388 = vmatprep.subr.mxu0 0.0
        %1389 = vmatpush1.msra.mxu0 0.0
        %1390 = vmatprep.subr.mxu0 0.0
        %1391 = vmatpush1.msra.mxu0 0.0
        %1392 = vmatprep.subr.mxu0 0.0
        %1393 = vmatpush1.msra.mxu0 0.0
        %1394 = vmatprep.subr.mxu0 0.0
        %1395 = vmatpush1.msra.mxu0 0.0
        %1396 = vmatprep.subr.mxu0 0.0
        %1397 = vmatpush1.msra.mxu0 0.0
        %1398 = vmatprep.subr.mxu0 0.0
        %1399 = vmatpush1.msra.mxu0 0.0
        %1400 = vmatprep.subr.mxu0 0.0
        %1401 = vmatpush1.msra.mxu0 0.0
        %1402 = vmatprep.subr.mxu0 0.0
        %1403 = vmatpush1.msra.mxu0 0.0
        %1404 = vmatprep.subr.mxu0 0.0
        %1405 = vmatpush1.msra.mxu0 0.0
        %1406 = vmatprep.subr.mxu0 0.0
        %1407 = vmatpush1.msra.mxu0 0.0
        %1408 = vmatprep.subr.mxu0 0.0
        %1409 = vmatpush1.msra.mxu0 0.0
        %1410 = vmatprep.mubr.f32.mxu0 0.0
        %1411 = vmatmul.mubr.f32.gmra.mrb[0].mxu0 %v1344
        %v1412 = vpop.f32.mrb[0].mxu0
        %v1413 = vadd.f32 0.0, %v1412
        %v1414 = vpop.f32.mrb[0].mxu0
        %1415 = vdwg.mxu0
        %v1416 = vld [vmem:[%s9] sm:$0x1]
        %v1417 = vld [vmem:[%s10] sm:$0x1]
        %v1418 = vsel %vm1095, %v1413, 0.0
        %1419 = vadd.xlane.f32.xlu0 %v1418
        %v1420 = vpop.xlane.xlu0 %1419
        %v1421 = vrcp.pop 32.0
        %v1422 = vmul.f32 %v1420, %v1421
        %v1423 = vmul.f32 %v1413, %v1413
        %v1424 = vsel %vm1095, %v1423, 0.0
        %1425 = vadd.xlane.f32.xlu0 %v1424
        %v1426 = vpop.xlane.xlu0 %1425
        %v1427 = vmul.f32 %v1426, %v1421
        %v1428 = vmul.f32 %v1422, %v1422
        %v1429 = vsub.f32 %v1427, %v1428
        %v1430 = vmax.f32 %v1429, 0.0
        %v1431 = vsub.f32 %v1413, %v1422
        %v1432 = vadd.f32 %v1430, 1e-05
        %v1433 = vrsqrt.pop %v1432
        %v1434 = vmul.f32 %v1431, %v1433
        %v1436 = vlaneseq
        %v1437 = vshrl.u32 %v1436, 7
        %v1438 = vsub.s32 0, %v1437
        %v1439 = vrot.slane %v1416, %v1438
        %v1441 = vmul.f32 %v1434, %v1439
        %v1443 = vlaneseq
        %v1444 = vshrl.u32 %v1443, 7
        %v1445 = vsub.s32 0, %v1444
        %v1446 = vrot.slane %v1417, %v1445
        %v1448 = vadd.f32 %v1441, %v1446
        %v1449 = vld [vmem:[#allocation15] sm:$0xff]
        %v1450 = vld [vmem:[#allocation15 + $0x8] sm:$0xff]
        %v1451 = vld [vmem:[#allocation15 + $0x10] sm:$0xff]
        %v1452 = vld [vmem:[#allocation15 + $0x18] sm:$0xff]
        %v1453 = vld [vmem:[#allocation16] sm:$0xff]
        %v1454 = vld [vmem:[#allocation16 + $0x8] sm:$0xff]
        %v1455 = vld [vmem:[#allocation16 + $0x10] sm:$0xff]
        %v1456 = vld [vmem:[#allocation16 + $0x18] sm:$0xff]
        %v1458 = vsel %vm1095, %v1448, 0
        %1460 = vmatprep.subr.mxu0 0.0
        %1461 = vmatpush1.msra.mxu0 %v1453
        %1462 = vmatprep.subr.mxu0 0.0
        %1463 = vmatpush1.msra.mxu0 %v1454
        %1464 = vmatprep.subr.mxu0 0.0
        %1465 = vmatpush1.msra.mxu0 %v1455
        %1466 = vmatprep.subr.mxu0 0.0
        %1467 = vmatpush1.msra.mxu0 %v1456
        %1468 = vmatprep.subr.mxu0 0.0
        %1469 = vmatpush1.msra.mxu0 0.0
        %1470 = vmatprep.subr.mxu0 0.0
        %1471 = vmatpush1.msra.mxu0 0.0
        %1472 = vmatprep.subr.mxu0 0.0
        %1473 = vmatpush1.msra.mxu0 0.0
        %1474 = vmatprep.subr.mxu0 0.0
        %1475 = vmatpush1.msra.mxu0 0.0
        %1476 = vmatprep.subr.mxu0 0.0
        %1477 = vmatpush1.msra.mxu0 0.0
        %1478 = vmatprep.subr.mxu0 0.0
        %1479 = vmatpush1.msra.mxu0 0.0
        %1480 = vmatprep.subr.mxu0 0.0
        %1481 = vmatpush1.msra.mxu0 0.0
        %1482 = vmatprep.subr.mxu0 0.0
        %1483 = vmatpush1.msra.mxu0 0.0
        %1484 = vmatprep.subr.mxu0 0.0
        %1485 = vmatpush1.msra.mxu0 0.0
        %1486 = vmatprep.subr.mxu0 0.0
        %1487 = vmatpush1.msra.mxu0 0.0
        %1488 = vmatprep.subr.mxu0 0.0
        %1489 = vmatpush1.msra.mxu0 0.0
        %1490 = vmatprep.subr.mxu0 0.0
        %1491 = vmatpush1.msra.mxu0 0.0
        %1492 = vmatprep.subr.mxu0 0.0
        %1493 = vmatpush1.msra.mxu0 0.0
        %1494 = vmatprep.subr.mxu0 0.0
        %1495 = vmatpush1.msra.mxu0 0.0
        %1496 = vmatprep.subr.mxu0 0.0
        %1497 = vmatpush1.msra.mxu0 0.0
        %1498 = vmatprep.subr.mxu0 0.0
        %1499 = vmatpush1.msra.mxu0 0.0
        %1500 = vmatprep.subr.mxu0 0.0
        %1501 = vmatpush1.msra.mxu0 0.0
        %1502 = vmatprep.subr.mxu0 0.0
        %1503 = vmatpush1.msra.mxu0 0.0
        %1504 = vmatprep.subr.mxu0 0.0
        %1505 = vmatpush1.msra.mxu0 0.0
        %1506 = vmatprep.subr.mxu0 0.0
        %1507 = vmatpush1.msra.mxu0 0.0
        %1508 = vmatprep.subr.mxu0 0.0
        %1509 = vmatpush1.msra.mxu0 0.0
        %1510 = vmatprep.subr.mxu0 0.0
        %1511 = vmatpush1.msra.mxu0 0.0
        %1512 = vmatprep.subr.mxu0 0.0
        %1513 = vmatpush1.msra.mxu0 0.0
        %1514 = vmatprep.subr.mxu0 0.0
        %1515 = vmatpush1.msra.mxu0 0.0
        %1516 = vmatprep.subr.mxu0 0.0
        %1517 = vmatpush1.msra.mxu0 0.0
        %1518 = vmatprep.subr.mxu0 0.0
        %1519 = vmatpush1.msra.mxu0 0.0
        %1520 = vmatprep.subr.mxu0 0.0
        %1521 = vmatpush1.msra.mxu0 0.0
        %1522 = vmatprep.subr.mxu0 0.0
        %1523 = vmatpush1.msra.mxu0 0.0
        %1524 = vmatprep.mubr.f32.mxu0 0.0
        %1525 = vmatmul.mubr.f32.gmra.mrb[0].mxu0 %v1458
        %v1526 = vpop.f32.mrb[0].mxu0
        %v1527 = vadd.f32 0.0, %v1526
        %v1528 = vpop.f32.mrb[0].mxu0
        %1529 = vdwg.mxu0
        %1530 = vmatprep.subr.mxu0 0.0
        %1531 = vmatpush1.msra.mxu0 %v1449
        %1532 = vmatprep.subr.mxu0 0.0
        %1533 = vmatpush1.msra.mxu0 %v1450
        %1534 = vmatprep.subr.mxu0 0.0
        %1535 = vmatpush1.msra.mxu0 %v1451
        %1536 = vmatprep.subr.mxu0 0.0
        %1537 = vmatpush1.msra.mxu0 %v1452
        %1538 = vmatprep.subr.mxu0 0.0
        %1539 = vmatpush1.msra.mxu0 0.0
        %1540 = vmatprep.subr.mxu0 0.0
        %1541 = vmatpush1.msra.mxu0 0.0
        %1542 = vmatprep.subr.mxu0 0.0
        %1543 = vmatpush1.msra.mxu0 0.0
        %1544 = vmatprep.subr.mxu0 0.0
        %1545 = vmatpush1.msra.mxu0 0.0
        %1546 = vmatprep.subr.mxu0 0.0
        %1547 = vmatpush1.msra.mxu0 0.0
        %1548 = vmatprep.subr.mxu0 0.0
        %1549 = vmatpush1.msra.mxu0 0.0
        %1550 = vmatprep.subr.mxu0 0.0
        %1551 = vmatpush1.msra.mxu0 0.0
        %1552 = vmatprep.subr.mxu0 0.0
        %1553 = vmatpush1.msra.mxu0 0.0
        %1554 = vmatprep.subr.mxu0 0.0
        %1555 = vmatpush1.msra.mxu0 0.0
        %1556 = vmatprep.subr.mxu0 0.0
        %1557 = vmatpush1.msra.mxu0 0.0
        %1558 = vmatprep.subr.mxu0 0.0
        %1559 = vmatpush1.msra.mxu0 0.0
        %1560 = vmatprep.subr.mxu0 0.0
        %1561 = vmatpush1.msra.mxu0 0.0
        %1562 = vmatprep.subr.mxu0 0.0
        %1563 = vmatpush1.msra.mxu0 0.0
        %1564 = vmatprep.subr.mxu0 0.0
        %1565 = vmatpush1.msra.mxu0 0.0
        %1566 = vmatprep.subr.mxu0 0.0
        %1567 = vmatpush1.msra.mxu0 0.0
        %1568 = vmatprep.subr.mxu0 0.0
        %1569 = vmatpush1.msra.mxu0 0.0
        %1570 = vmatprep.subr.mxu0 0.0
        %1571 = vmatpush1.msra.mxu0 0.0
        %1572 = vmatprep.subr.mxu0 0.0
        %1573 = vmatpush1.msra.mxu0 0.0
        %1574 = vmatprep.subr.mxu0 0.0
        %1575 = vmatpush1.msra.mxu0 0.0
        %1576 = vmatprep.subr.mxu0 0.0
        %1577 = vmatpush1.msra.mxu0 0.0
        %1578 = vmatprep.subr.mxu0 0.0
        %1579 = vmatpush1.msra.mxu0 0.0
        %1580 = vmatprep.subr.mxu0 0.0
        %1581 = vmatpush1.msra.mxu0 0.0
        %1582 = vmatprep.subr.mxu0 0.0
        %1583 = vmatpush1.msra.mxu0 0.0
        %1584 = vmatprep.subr.mxu0 0.0
        %1585 = vmatpush1.msra.mxu0 0.0
        %1586 = vmatprep.subr.mxu0 0.0
        %1587 = vmatpush1.msra.mxu0 0.0
        %1588 = vmatprep.subr.mxu0 0.0
        %1589 = vmatpush1.msra.mxu0 0.0
        %1590 = vmatprep.subr.mxu0 0.0
        %1591 = vmatpush1.msra.mxu0 0.0
        %1592 = vmatprep.subr.mxu0 0.0
        %1593 = vmatpush1.msra.mxu0 0.0
        %1594 = vmatprep.mubr.f32.mxu0 0.0
        %1595 = vmatmul.mubr.f32.gmra.mrb[0].mxu0 %v1097
        %v1596 = vpop.f32.mrb[0].mxu0
        %v1597 = vadd.f32 %v1527, %v1596
        %v1598 = vpop.f32.mrb[0].mxu0
        %1599 = vdwg.mxu0
        %v1600 = vmax.f32 %v1597, 0.0
        %v1601 = vld [vmem:[%s13] sm:$0xff]
        %v1602 = vld [vmem:[%s13 + $0x8] sm:$0xff]
        %v1603 = vld [vmem:[%s13 + $0x10] sm:$0xff]
        %v1604 = vld [vmem:[%s13 + $0x18] sm:$0xff]
        %v1605 = vld [vmem:[%s13 + $0x20] sm:$0xff]
        %v1606 = vld [vmem:[%s13 + $0x28] sm:$0xff]
        %v1607 = vld [vmem:[%s13 + $0x30] sm:$0xff]
        %v1608 = vld [vmem:[%s13 + $0x38] sm:$0xff]
        %vm1609 = vcmask 523264
        %v1611 = vsel %vm1609, %v1600, 0
        %1613 = vmatprep.subr.mxu0 0.0
        %1614 = vmatpush1.msra.mxu0 %v1601
        %1615 = vmatprep.subr.mxu0 0.0
        %1616 = vmatpush1.msra.mxu0 %v1602
        %1617 = vmatprep.subr.mxu0 0.0
        %1618 = vmatpush1.msra.mxu0 %v1603
        %1619 = vmatprep.subr.mxu0 0.0
        %1620 = vmatpush1.msra.mxu0 %v1604
        %1621 = vmatprep.subr.mxu0 0.0
        %1622 = vmatpush1.msra.mxu0 %v1605
        %1623 = vmatprep.subr.mxu0 0.0
        %1624 = vmatpush1.msra.mxu0 %v1606
        %1625 = vmatprep.subr.mxu0 0.0
        %1626 = vmatpush1.msra.mxu0 %v1607
        %1627 = vmatprep.subr.mxu0 0.0
        %1628 = vmatpush1.msra.mxu0 %v1608
        %1629 = vmatprep.subr.mxu0 0.0
        %1630 = vmatpush1.msra.mxu0 0.0
        %1631 = vmatprep.subr.mxu0 0.0
        %1632 = vmatpush1.msra.mxu0 0.0
        %1633 = vmatprep.subr.mxu0 0.0
        %1634 = vmatpush1.msra.mxu0 0.0
        %1635 = vmatprep.subr.mxu0 0.0
        %1636 = vmatpush1.msra.mxu0 0.0
        %1637 = vmatprep.subr.mxu0 0.0
        %1638 = vmatpush1.msra.mxu0 0.0
        %1639 = vmatprep.subr.mxu0 0.0
        %1640 = vmatpush1.msra.mxu0 0.0
        %1641 = vmatprep.subr.mxu0 0.0
        %1642 = vmatpush1.msra.mxu0 0.0
        %1643 = vmatprep.subr.mxu0 0.0
        %1644 = vmatpush1.msra.mxu0 0.0
        %1645 = vmatprep.subr.mxu0 0.0
        %1646 = vmatpush1.msra.mxu0 0.0
        %1647 = vmatprep.subr.mxu0 0.0
        %1648 = vmatpush1.msra.mxu0 0.0
        %1649 = vmatprep.subr.mxu0 0.0
        %1650 = vmatpush1.msra.mxu0 0.0
        %1651 = vmatprep.subr.mxu0 0.0
        %1652 = vmatpush1.msra.mxu0 0.0
        %1653 = vmatprep.subr.mxu0 0.0
        %1654 = vmatpush1.msra.mxu0 0.0
        %1655 = vmatprep.subr.mxu0 0.0
        %1656 = vmatpush1.msra.mxu0 0.0
        %1657 = vmatprep.subr.mxu0 0.0
        %1658 = vmatpush1.msra.mxu0 0.0
        %1659 = vmatprep.subr.mxu0 0.0
        %1660 = vmatpush1.msra.mxu0 0.0
        %1661 = vmatprep.subr.mxu0 0.0
        %1662 = vmatpush1.msra.mxu0 0.0
        %1663 = vmatprep.subr.mxu0 0.0
        %1664 = vmatpush1.msra.mxu0 0.0
        %1665 = vmatprep.subr.mxu0 0.0
        %1666 = vmatpush1.msra.mxu0 0.0
        %1667 = vmatprep.subr.mxu0 0.0
        %1668 = vmatpush1.msra.mxu0 0.0
        %1669 = vmatprep.subr.mxu0 0.0
        %1670 = vmatpush1.msra.mxu0 0.0
        %1671 = vmatprep.subr.mxu0 0.0
        %1672 = vmatpush1.msra.mxu0 0.0
        %1673 = vmatprep.subr.mxu0 0.0
        %1674 = vmatpush1.msra.mxu0 0.0
        %1675 = vmatprep.subr.mxu0 0.0
        %1676 = vmatpush1.msra.mxu0 0.0
        %1677 = vmatprep.mubr.f32.mxu0 0.0
        %1678 = vmatmul.mubr.f32.gmra.mrb[0].mxu0 %v1611
        %v1679 = vpop.f32.mrb[0].mxu0
        %v1680 = vadd.f32 0.0, %v1679
        %v1681 = vpop.f32.mrb[0].mxu0
        %1682 = vdwg.mxu0
        %v1683 = vld [vmem:[%s14] sm:$0x1]
        %v1684 = vld [vmem:[%s15] sm:$0x1]
        %v1685 = vsel %vm1095, %v1680, 0.0
        %1686 = vadd.xlane.f32.xlu0 %v1685
        %v1687 = vpop.xlane.xlu0 %1686
        %v1688 = vmul.f32 %v1687, %v1421
        %v1689 = vmul.f32 %v1680, %v1680
        %v1690 = vsel %vm1095, %v1689, 0.0
        %1691 = vadd.xlane.f32.xlu0 %v1690
        %v1692 = vpop.xlane.xlu0 %1691
        %v1693 = vmul.f32 %v1692, %v1421
        %v1694 = vmul.f32 %v1688, %v1688
        %v1695 = vsub.f32 %v1693, %v1694
        %v1696 = vmax.f32 %v1695, 0.0
        %v1697 = vsub.f32 %v1680, %v1688
        %v1698 = vadd.f32 %v1696, 1e-05
        %v1699 = vrsqrt.pop %v1698
        %v1700 = vmul.f32 %v1697, %v1699
        %v1702 = vlaneseq
        %v1703 = vshrl.u32 %v1702, 7
        %v1704 = vsub.s32 0, %v1703
        %v1705 = vrot.slane %v1683, %v1704
        %v1707 = vmul.f32 %v1700, %v1705
        %v1709 = vlaneseq
        %v1710 = vshrl.u32 %v1709, 7
        %v1711 = vsub.s32 0, %v1710
        %v1712 = vrot.slane %v1684, %v1711
        %v1714 = vadd.f32 %v1707, %v1712
        %v1715 = vadd.f32 %v1090, %v1714
        %1716 = vst.msk [vmem:[%s697] sm:$0xff] %vm1095, %v1715
        %s1717 = sand.u32 %s414, 1
        %s1718 = scalar_lea.sflag [#allocation6], %s1717
        %s1719 = sand.u32 %s414, 1
        %s1720 = smul.addr %s1719, 8
        %s1721 = scalar_lea.vmem [#allocation18], %s1720
        // Predicated region
        $region121: #{tpu_custom_call.1} parent=83 // pred_check
          %p1722 = pneg %p424
        $region122: #{tpu_custom_call.1} parent=83 // pred_check_branch
          %1724 = sbr.rel (%p1722) target = $region124
        $region123: #{tpu_custom_call.1} parent=83 // pred_region
          %s1726 = ssub.s32 128, 128
          %1727 = vsyncadd %s1718, %s1726
          %s1728 = sadd.s32 %s44, %s43
          %s1729 = smul.addr %s1728, 128
          %s1730 = scalar_lea.hbm %s16, %s1729
          %s1732 = sshll.u32 %s1721, 4
          %s1733 = int_to_ptr.vmem [resolvable:$true] %s1732
          %1735 = dma.vmem_to_hbm [thread:$0]  %s1733, 128, %s1730, %s1718
        $region124: #{tpu_custom_call.1} parent=83 // pred_fallthru
          _
      $region84: #{tpu_custom_call.1} parent=5 // pred_fallthru
        _
      %p1736 = scmp.le.s32.totalorder 2, %s34
      // Predicated region
      $region125: #{tpu_custom_call.1} parent=5 // pred_check
        %p1737 = pneg %p1736
      $region126: #{tpu_custom_call.1} parent=5 // pred_check_branch
        %1739 = sbr.rel (%p1737) target = $region128
      $region127: #{tpu_custom_call.1} parent=5 // pred_region
        %s1740 = ssub.s32 %s34, 2
        // Predicated region
        $region129: #{tpu_custom_call.1} parent=127 // pred_check
          %p1741 = pneg %p430
        $region130: #{tpu_custom_call.1} parent=127 // pred_check_branch
          %1743 = sbr.rel (%p1741) target = $region132
        $region131: #{tpu_custom_call.1} parent=127 // pred_region
          %s1744 = sand.u32 %s415, 1
          %s1745 = scalar_lea.sflag [#allocation6], %s1744
          %s1746 = sand.u32 %s415, 1
          %s1747 = smul.addr %s1746, 8
          %s1748 = scalar_lea.vmem [#allocation18], %s1747
          %1749 = dma.done %s1745, 128
        $region132: #{tpu_custom_call.1} parent=127 // pred_fallthru
          _
      $region128: #{tpu_custom_call.1} parent=5 // pred_fallthru
        _
    $region6: #{tpu_custom_call.1} parent=1 // loop_footer
      %s38 = sadd.s32 1, %s34
    $region7: #{tpu_custom_call.1} parent=1 // loop_footer_branch
      %33 = sbr.rel target = $region3
    $region8: #{tpu_custom_call.1} parent=1 // loop_exit
      _
    %1750 = vsyncpa [#allocation5], 1
    %s1751 = scalar_lea.sflag [#allocation5], 1
    %1752 = vsyncpa %s1751, 1
    %1753 = vsyncpa [#allocation8], 1
    %s1754 = scalar_lea.sflag [#allocation8], 1
    %1755 = vsyncpa %s1754, 1
    %1756 = vsyncpa [#allocation11], 1
    %1757 = vsyncpa [#allocation14], 1
    %1758 = vsyncpa [#allocation17], 1
    %1759 = vsyncpa [#allocation6], 1
    %s1760 = scalar_lea.sflag [#allocation6], 1
    %1761 = vsyncpa %s1760, 1

</llo_original>
